<compile_context>
chip_gen: v7x
topology: tpu7x:2x2x1
jax: 0.10.0
libtpu: 0.0.40
codegen_flags: <defaults>
</compile_context>

<pallas_src>
import functools

import jax
import jax.numpy as jnp
from jax.experimental import pallas as pl
from jax.experimental.pallas import tpu as pltpu


# ---------------------------------------------------------------------------
# Pallas kernel
# ---------------------------------------------------------------------------
def bond_vector_decoder_kernel(
    h0_ref,                      # (Bb, 2H)    fused initial state [h_fwd | h_bwd]
    w_ref,                       # (2H, 3*GP)  block-diag recurrent weight; gate groups padded to GP lanes
    br_ref, bz_ref,              # (1, 2H)     pre-folded (b_ih + b_hh) for r / z gates
    bhn_ref, bin_ref,            # (1, 2H)     b_hh_n and b_ih_n (kept split: PyTorch n-gate semantics)
    wfc_f_ref,                   # (2H, O)     fc weight, fwd rows 0:H, rows H:2H zeroed
    wfc_b_ref,                   # (2H, O)     fc weight, bwd rows H:2H, rows 0:H zeroed
    bfc_ref,                     # (1, O)
    out_ref,                     # (T, Bb, O)  output block
    hseq,                        # (T*Bb, 2H)  VMEM scratch: row block s = [fwd_s | bwd_s]
    *, seq_length,
):
    T = seq_length
    Bb, H2 = h0_ref.shape                     # H2 = 2*H
    GP = w_ref.shape[1] // 3                  # padded per-gate lane group (multiple of 128)

    w = w_ref[...]                            # hoisted once
    # Broadcast biases once (JAX does not CSE broadcast_in_dim inside the unrolled loop).
    # block_b is capped at 32 rows, so these stay a handful of vregs.
    b_r = jnp.broadcast_to(br_ref[...], (Bb, H2))
    b_z = jnp.broadcast_to(bz_ref[...], (Bb, H2))
    b_hn = jnp.broadcast_to(bhn_ref[...], (Bb, H2))
    b_in = jnp.broadcast_to(bin_ref[...], (Bb, H2))

    h = h0_ref[...]                           # (Bb, 2H), both directions fused on the lane axis

    # Static unroll: T is a compile-time int and small here.
    # TODO(synk): switch to lax.fori_loop (capped unroll) if T grows beyond a few dozen steps.
    for s in range(T):
        g = jnp.dot(h, w, preferred_element_type=jnp.float32)        # (Bb, 3*GP), one MXU push
        # Each gate slab starts at a 128-lane boundary -> no lane relayout before the VPU ops.
        r = jax.nn.sigmoid(g[:, 0:H2] + b_r)
        z = jax.nn.sigmoid(g[:, GP:GP + H2] + b_z)
        n = jnp.tanh(b_in + r * (g[:, 2 * GP:2 * GP + H2] + b_hn))
        h = (1.0 - z) * n + z * h

        # ONE contiguous full-width store per step (fwd+bwd fused); bwd time reversal
        # is handled in the FC epilogue instead of strided half-lane stores here.
        hseq[pl.ds(s * Bb, Bb), :] = h

    # FC epilogue: split the (2H, O) fc weight into zero-padded fwd/bwd halves so both
    # dots consume the full contiguous hseq slab (no lane slicing of the wide operand).
    hs = hseq[...]
    yf = jnp.dot(hs, wfc_f_ref[...], preferred_element_type=jnp.float32)   # (T*Bb, O)
    yb = jnp.dot(hs, wfc_b_ref[...], preferred_element_type=jnp.float32)   # (T*Bb, O)
    bfc = bfc_ref[...]
    for t in range(T):
        # fwd contribution from step t, bwd contribution from step T-1-t (static offsets).
        yt = yf[t * Bb:(t + 1) * Bb, :] + yb[(T - 1 - t) * Bb:(T - t) * Bb, :] + bfc
        # NOTE: O=3 last dim -> masked partial store; acceptable at this footprint (epilogue only).
        out_ref[t] = jnp.tanh(yt).astype(out_ref.dtype)


# ---------------------------------------------------------------------------
# Batch-block selection: <=32 rows (spill-safe), sublane aligned, nb>=2 when possible (v7x)
# ---------------------------------------------------------------------------
def _pick_block_b(B):
    if B <= 8:
        return B
    for cand in (32, 24, 16, 8):
        if cand <= B // 2 and B % cand == 0:
            return cand
    return B                        # fall back to full batch (always a legal block shape)


# ---------------------------------------------------------------------------
# Wrapper (parameter fusing / layout prep is plain-JAX glue; run this under jit)
# ---------------------------------------------------------------------------
def bond_vector_decoder(latent_A, params, seq_length, block_b=None):
    B, latent_dim = latent_A.shape
    assert latent_dim % 2 == 0
    H = latent_dim // 2
    H2 = 2 * H
    O = params["w_fc"].shape[0]
    T = seq_length
    GP = ((H2 + 127) // 128) * 128            # per-gate lane group, padded to a vreg boundary

    latent_A = latent_A.astype(jnp.float32)
    # h_0 fwd = latent[:, :H], bwd = latent[:, H:]; lane-concatenated [fwd | bwd] == latent itself.
    h0 = latent_A

    # NOTE: weight_ih_l0{,_reverse} are mathematically unused (GRU input is all-zeros);
    # only bias_ih contributes.
    whh_f = params["weight_hh_l0"].astype(jnp.float32)           # (3H, H)
    whh_b = params["weight_hh_l0_reverse"].astype(jnp.float32)   # (3H, H)

    zeros_hh = jnp.zeros((H, H), jnp.float32)

    def gate_block(g):
        wf = whh_f[g * H:(g + 1) * H, :].T                        # (H, H): h_f -> gate_f
        wb = whh_b[g * H:(g + 1) * H, :].T                        # (H, H): h_b -> gate_b
        top = jnp.concatenate([wf, zeros_hh], axis=1)             # (H, 2H)
        bot = jnp.concatenate([zeros_hh, wb], axis=1)             # (H, 2H)
        blk = jnp.concatenate([top, bot], axis=0)                 # (2H, 2H)
        if GP > H2:                                               # pad gate group to 128-lane boundary
            blk = jnp.concatenate(
                [blk, jnp.zeros((H2, GP - H2), jnp.float32)], axis=1)
        return blk                                                # (2H, GP)

    w_big = jnp.concatenate([gate_block(0), gate_block(1), gate_block(2)], axis=1)  # (2H, 3*GP)

    bih_f = params["bias_ih_l0"].astype(jnp.float32)
    bhh_f = params["bias_hh_l0"].astype(jnp.float32)
    bih_b = params["bias_ih_l0_reverse"].astype(jnp.float32)
    bhh_b = params["bias_hh_l0_reverse"].astype(jnp.float32)

    # Pre-folded biases (r, z: b_ih + b_hh; n: keep b_hn / b_in split for PyTorch n-gate semantics).
    b_r = jnp.concatenate([bih_f[0:H] + bhh_f[0:H],
                           bih_b[0:H] + bhh_b[0:H]])[None, :]                 # (1, 2H)
    b_z = jnp.concatenate([bih_f[H:2 * H] + bhh_f[H:2 * H],
                           bih_b[H:2 * H] + bhh_b[H:2 * H]])[None, :]         # (1, 2H)
    b_hn = jnp.concatenate([bhh_f[2 * H:], bhh_b[2 * H:]])[None, :]           # (1, 2H)
    b_in = jnp.concatenate([bih_f[2 * H:], bih_b[2 * H:]])[None, :]           # (1, 2H)

    wfc = params["w_fc"].astype(jnp.float32).T                                # (2H, O)
    zeros_fc = jnp.zeros((H, O), jnp.float32)
    wfc_f = jnp.concatenate([wfc[:H], zeros_fc], axis=0)                      # (2H, O)
    wfc_b = jnp.concatenate([zeros_fc, wfc[H:]], axis=0)                      # (2H, O)
    bfc = params["b_fc"].astype(jnp.float32)[None, :]                         # (1, O)

    if block_b is None:
        block_b = _pick_block_b(B)
    assert B % block_b == 0, "batch must be divisible by the batch block size"
    nb = B // block_b

    # VMEM scratch = T * block_b * 2H * 4 bytes (tiny here).  If T ever grows large, tile the
    # hseq slab / FC epilogue over time and/or raise vmem_limit_bytes explicitly.
    kernel = functools.partial(bond_vector_decoder_kernel, seq_length=T)

    out_tbo = pl.pallas_call(
        kernel,
        out_shape=jax.ShapeDtypeStruct((T, B, O), jnp.float32),
        grid_spec=pltpu.PrefetchScalarGridSpec(
            num_scalar_prefetch=0,
            grid=(nb,),
            in_specs=[
                pl.BlockSpec((block_b, H2), lambda i: (i, 0)),        # h0
                pl.BlockSpec((H2, 3 * GP), lambda i: (0, 0)),         # w_big
                pl.BlockSpec((1, H2), lambda i: (0, 0)),              # b_r
                pl.BlockSpec((1, H2), lambda i: (0, 0)),              # b_z
                pl.BlockSpec((1, H2), lambda i: (0, 0)),              # b_hn
                pl.BlockSpec((1, H2), lambda i: (0, 0)),              # b_in
                pl.BlockSpec((H2, O), lambda i: (0, 0)),              # wfc_f
                pl.BlockSpec((H2, O), lambda i: (0, 0)),              # wfc_b
                pl.BlockSpec((1, O), lambda i: (0, 0)),               # bfc
            ],
            out_specs=pl.BlockSpec((T, block_b, O), lambda i: (0, i, 0)),
            scratch_shapes=[pltpu.VMEM((T * block_b, H2), jnp.float32)],
        ),
        compiler_params=pltpu.CompilerParams(
            dimension_semantics=("parallel",)),
    )(h0, w_big, b_r, b_z, b_hn, b_in, wfc_f, wfc_b, bfc)

    # TODO(synk): the (T,B,O)->(B,T,O) transpose could be folded into the epilogue; it is a
    # negligible extra XLA op at these sizes and kept for clarity.
    return jnp.transpose(out_tbo, (1, 0, 2))   # -> (B, T, O), PyTorch batch_first


# ---------------------------------------------------------------------------
# Pure-JAX reference (replicates torch.nn.GRU math with zero inputs), full f32 precision
# ---------------------------------------------------------------------------
def bond_vector_decoder_ref(latent_A, params, seq_length):
    B, latent_dim = latent_A.shape
    H = latent_dim // 2
    hp = jax.lax.Precision.HIGHEST

    def cell(h, w_hh, b_ih, b_hh):
        g = jnp.dot(h, w_hh.T, precision=hp) + b_hh
        r = jax.nn.sigmoid(b_ih[:H] + g[:, :H])
        z = jax.nn.sigmoid(b_ih[H:2 * H] + g[:, H:2 * H])
        n = jnp.tanh(b_ih[2 * H:] + r * g[:, 2 * H:])
        return (1.0 - z) * n + z * h

    hf, hb = latent_A[:, :H], latent_A[:, H:]
    outs_f, outs_b = [], []
    for _ in range(seq_length):
        hf = cell(hf, params["weight_hh_l0"], params["bias_ih_l0"],
                  params["bias_hh_l0"])
        outs_f.append(hf)
    for _ in range(seq_length):
        hb = cell(hb, params["weight_hh_l0_reverse"], params["bias_ih_l0_reverse"],
                  params["bias_hh_l0_reverse"])
        outs_b.append(hb)
    out_f = jnp.stack(outs_f, axis=1)
    out_b = jnp.stack(outs_b[::-1], axis=1)
    out = jnp.concatenate([out_f, out_b], axis=-1)
    return jnp.tanh(jnp.dot(out, params["w_fc"].T, precision=hp) + params["b_fc"])


# ---------------------------------------------------------------------------
# Deterministic parameter init + smoke test
# ---------------------------------------------------------------------------
def init_params(key, latent_dim_A=64, output_size=3):
    H = latent_dim_A // 2
    s_gru = 1.0 / jnp.sqrt(H)
    s_fc = 1.0 / jnp.sqrt(latent_dim_A)
    keys = jax.random.split(key, 12)

    def u(k, shape, s):
        return jax.random.uniform(k, shape, jnp.float32, -s, s)

    return {
        # weight_ih is unused (zero GRU inputs) but created to mirror the nn.GRU params.
        "weight_ih_l0":         u(keys[0], (3 * H, output_size), s_gru),
        "weight_hh_l0":         u(keys[1], (3 * H, H), s_gru),
        "bias_ih_l0":           u(keys[2], (3 * H,), s_gru),
        "bias_hh_l0":           u(keys[3], (3 * H,), s_gru),
        "weight_ih_l0_reverse": u(keys[4], (3 * H, output_size), s_gru),
        "weight_hh_l0_reverse": u(keys[5], (3 * H, H), s_gru),
        "bias_ih_l0_reverse":   u(keys[6], (3 * H,), s_gru),
        "bias_hh_l0_reverse":   u(keys[7], (3 * H,), s_gru),
        "w_fc":                 u(keys[8], (output_size, latent_dim_A), s_fc),
        "b_fc":                 u(keys[9], (output_size,), s_fc),
    }


if __name__ == "__main__":
    B, latent_dim_A, output_size, seq_length = 2, 64, 3, 8

    key = jax.random.PRNGKey(0)
    k_param, k_lat = jax.random.split(key)
    params = init_params(k_param, latent_dim_A, output_size)
    latent_A = jax.random.normal(k_lat, (B, latent_dim_A), jnp.float32)

    # Run the whole wrapper (parameter fusion + pallas_call) under one jit.
    decode = jax.jit(functools.partial(bond_vector_decoder, seq_length=seq_length))
    out = jax.block_until_ready(decode(latent_A, params))

    ref = bond_vector_decoder_ref(latent_A, params, seq_length)
    assert out.shape == (B, seq_length, output_size), out.shape
    max_err = float(jnp.max(jnp.abs(out - ref)))
    assert max_err < 1e-4, max_err

    print("KERNEL_OK")
</pallas_src>

<mosaic_0001>
module attributes {stable_mosaic.version = 11 : i64} {
  func.func @bond_vector_decoder_kernel(%arg0: i32, %arg1: memref<2x64xf32, #tpu.memory_space<vmem>>, %arg2: memref<64x384xf32, #tpu.memory_space<vmem>>, %arg3: memref<1x64xf32, #tpu.memory_space<vmem>>, %arg4: memref<1x64xf32, #tpu.memory_space<vmem>>, %arg5: memref<1x64xf32, #tpu.memory_space<vmem>>, %arg6: memref<1x64xf32, #tpu.memory_space<vmem>>, %arg7: memref<64x3xf32, #tpu.memory_space<vmem>>, %arg8: memref<64x3xf32, #tpu.memory_space<vmem>>, %arg9: memref<1x3xf32, #tpu.memory_space<vmem>>, %arg10: memref<8x2x3xf32, #tpu.memory_space<vmem>>, %arg11: memref<16x64xf32, #tpu.memory_space<vmem>>) attributes {dimension_semantics = [#tpu.dimension_semantics<parallel>], iteration_bounds = array<i64: 1>, scalar_prefetch = 0 : i64, scratch_operands = 1 : i64, tpu.core_type = #tpu.core_type<tc>, window_params = [{transform_indices = @transform_0, window_bounds = array<i64: 2, 64>}, {pipeline_mode = #tpu.pipeline_mode<synchronous>, transform_indices = @transform_1, window_bounds = array<i64: 64, 384>}, {pipeline_mode = #tpu.pipeline_mode<synchronous>, transform_indices = @transform_2, window_bounds = array<i64: 1, 64>}, {pipeline_mode = #tpu.pipeline_mode<synchronous>, transform_indices = @transform_3, window_bounds = array<i64: 1, 64>}, {pipeline_mode = #tpu.pipeline_mode<synchronous>, transform_indices = @transform_4, window_bounds = array<i64: 1, 64>}, {pipeline_mode = #tpu.pipeline_mode<synchronous>, transform_indices = @transform_5, window_bounds = array<i64: 1, 64>}, {pipeline_mode = #tpu.pipeline_mode<synchronous>, transform_indices = @transform_6, window_bounds = array<i64: 64, 3>}, {pipeline_mode = #tpu.pipeline_mode<synchronous>, transform_indices = @transform_7, window_bounds = array<i64: 64, 3>}, {pipeline_mode = #tpu.pipeline_mode<synchronous>, transform_indices = @transform_8, window_bounds = array<i64: 1, 3>}, {transform_indices = @transform_9, window_bounds = array<i64: 8, 2, 3>}]} {
    %c0 = arith.constant 0 : index
    %c0_0 = arith.constant 0 : index
    %0 = vector.load %arg2[%c0, %c0_0] : memref<64x384xf32, #tpu.memory_space<vmem>>, vector<64x384xf32>
    %c0_1 = arith.constant 0 : index
    %c0_2 = arith.constant 0 : index
    %1 = vector.load %arg3[%c0_1, %c0_2] : memref<1x64xf32, #tpu.memory_space<vmem>>, vector<1x64xf32>
    %2 = vector.shape_cast %1 : vector<1x64xf32> to vector<1x64xf32>
    %3 = vector.broadcast %2 : vector<1x64xf32> to vector<2x64xf32>
    %c0_3 = arith.constant 0 : index
    %c0_4 = arith.constant 0 : index
    %4 = vector.load %arg4[%c0_3, %c0_4] : memref<1x64xf32, #tpu.memory_space<vmem>>, vector<1x64xf32>
    %5 = vector.shape_cast %4 : vector<1x64xf32> to vector<1x64xf32>
    %6 = vector.broadcast %5 : vector<1x64xf32> to vector<2x64xf32>
    %c0_5 = arith.constant 0 : index
    %c0_6 = arith.constant 0 : index
    %7 = vector.load %arg5[%c0_5, %c0_6] : memref<1x64xf32, #tpu.memory_space<vmem>>, vector<1x64xf32>
    %8 = vector.shape_cast %7 : vector<1x64xf32> to vector<1x64xf32>
    %9 = vector.broadcast %8 : vector<1x64xf32> to vector<2x64xf32>
    %c0_7 = arith.constant 0 : index
    %c0_8 = arith.constant 0 : index
    %10 = vector.load %arg6[%c0_7, %c0_8] : memref<1x64xf32, #tpu.memory_space<vmem>>, vector<1x64xf32>
    %11 = vector.shape_cast %10 : vector<1x64xf32> to vector<1x64xf32>
    %12 = vector.broadcast %11 : vector<1x64xf32> to vector<2x64xf32>
    %c0_9 = arith.constant 0 : index
    %c0_10 = arith.constant 0 : index
    %13 = vector.load %arg1[%c0_9, %c0_10] : memref<2x64xf32, #tpu.memory_space<vmem>>, vector<2x64xf32>
    %cst = arith.constant dense<0.000000e+00> : vector<2x384xf32>
    %14 = tpu.matmul %13, %0, %cst {dimension_numbers = #tpu.dot_dimension_numbers<[1], [0], [0], [1], [0, 0, 1, 1], [], []>} : vector<2x64xf32>, vector<64x384xf32>, vector<2x384xf32> -> vector<2x384xf32>
    %15 = vector.extract_strided_slice %14 {offsets = [0, 0], sizes = [2, 64], strides = [1, 1]} : vector<2x384xf32> to vector<2x64xf32>
    %16 = arith.addf %15, %3 : vector<2x64xf32>
    %17 = arith.negf %16 : vector<2x64xf32>
    %18 = math.exp %17 : vector<2x64xf32>
    %cst_11 = arith.constant 1.000000e+00 : f32
    %19 = vector.broadcast %cst_11 : f32 to vector<2x64xf32>
    %20 = arith.addf %19, %18 : vector<2x64xf32>
    %21 = arith.divf %19, %20 : vector<2x64xf32>
    %22 = vector.extract_strided_slice %14 {offsets = [0, 128], sizes = [2, 64], strides = [1, 1]} : vector<2x384xf32> to vector<2x64xf32>
    %23 = arith.addf %22, %6 : vector<2x64xf32>
    %24 = arith.negf %23 : vector<2x64xf32>
    %25 = math.exp %24 : vector<2x64xf32>
    %cst_12 = arith.constant 1.000000e+00 : f32
    %26 = vector.broadcast %cst_12 : f32 to vector<2x64xf32>
    %27 = arith.addf %26, %25 : vector<2x64xf32>
    %28 = arith.divf %26, %27 : vector<2x64xf32>
    %29 = vector.extract_strided_slice %14 {offsets = [0, 256], sizes = [2, 64], strides = [1, 1]} : vector<2x384xf32> to vector<2x64xf32>
    %30 = arith.addf %29, %9 : vector<2x64xf32>
    %31 = arith.mulf %21, %30 : vector<2x64xf32>
    %32 = arith.addf %12, %31 : vector<2x64xf32>
    %33 = math.tanh %32 : vector<2x64xf32>
    %cst_13 = arith.constant 1.000000e+00 : f32
    %34 = vector.broadcast %cst_13 : f32 to vector<2x64xf32>
    %35 = arith.subf %34, %28 : vector<2x64xf32>
    %36 = arith.mulf %35, %33 : vector<2x64xf32>
    %37 = arith.mulf %28, %13 : vector<2x64xf32>
    %38 = arith.addf %36, %37 : vector<2x64xf32>
    %c0_14 = arith.constant 0 : index
    %c0_15 = arith.constant 0 : index
    %39 = vector.load %arg11[%c0_14, %c0_15] : memref<16x64xf32, #tpu.memory_space<vmem>>, vector<2x64xf32>
    tpu.vector_store %arg11[%c0_14, %c0_15], %38 {strides = array<i32>} : memref<16x64xf32, #tpu.memory_space<vmem>>, vector<2x64xf32>,
    %cst_16 = arith.constant dense<0.000000e+00> : vector<2x384xf32>
    %40 = tpu.matmul %38, %0, %cst_16 {dimension_numbers = #tpu.dot_dimension_numbers<[1], [0], [0], [1], [0, 0, 1, 1], [], []>} : vector<2x64xf32>, vector<64x384xf32>, vector<2x384xf32> -> vector<2x384xf32>
    %41 = vector.extract_strided_slice %40 {offsets = [0, 0], sizes = [2, 64], strides = [1, 1]} : vector<2x384xf32> to vector<2x64xf32>
    %42 = arith.addf %41, %3 : vector<2x64xf32>
    %43 = arith.negf %42 : vector<2x64xf32>
    %44 = math.exp %43 : vector<2x64xf32>
    %cst_17 = arith.constant 1.000000e+00 : f32
    %45 = vector.broadcast %cst_17 : f32 to vector<2x64xf32>
    %46 = arith.addf %45, %44 : vector<2x64xf32>
    %47 = arith.divf %45, %46 : vector<2x64xf32>
    %48 = vector.extract_strided_slice %40 {offsets = [0, 128], sizes = [2, 64], strides = [1, 1]} : vector<2x384xf32> to vector<2x64xf32>
    %49 = arith.addf %48, %6 : vector<2x64xf32>
    %50 = arith.negf %49 : vector<2x64xf32>
    %51 = math.exp %50 : vector<2x64xf32>
    %cst_18 = arith.constant 1.000000e+00 : f32
    %52 = vector.broadcast %cst_18 : f32 to vector<2x64xf32>
    %53 = arith.addf %52, %51 : vector<2x64xf32>
    %54 = arith.divf %52, %53 : vector<2x64xf32>
    %55 = vector.extract_strided_slice %40 {offsets = [0, 256], sizes = [2, 64], strides = [1, 1]} : vector<2x384xf32> to vector<2x64xf32>
    %56 = arith.addf %55, %9 : vector<2x64xf32>
    %57 = arith.mulf %47, %56 : vector<2x64xf32>
    %58 = arith.addf %12, %57 : vector<2x64xf32>
    %59 = math.tanh %58 : vector<2x64xf32>
    %cst_19 = arith.constant 1.000000e+00 : f32
    %60 = vector.broadcast %cst_19 : f32 to vector<2x64xf32>
    %61 = arith.subf %60, %54 : vector<2x64xf32>
    %62 = arith.mulf %61, %59 : vector<2x64xf32>
    %63 = arith.mulf %54, %38 : vector<2x64xf32>
    %64 = arith.addf %62, %63 : vector<2x64xf32>
    %c2 = arith.constant 2 : index
    %c0_20 = arith.constant 0 : index
    %65 = vector.load %arg11[%c2, %c0_20] : memref<16x64xf32, #tpu.memory_space<vmem>>, vector<2x64xf32>
    tpu.vector_store %arg11[%c2, %c0_20], %64 {strides = array<i32>} : memref<16x64xf32, #tpu.memory_space<vmem>>, vector<2x64xf32>,
    %cst_21 = arith.constant dense<0.000000e+00> : vector<2x384xf32>
    %66 = tpu.matmul %64, %0, %cst_21 {dimension_numbers = #tpu.dot_dimension_numbers<[1], [0], [0], [1], [0, 0, 1, 1], [], []>} : vector<2x64xf32>, vector<64x384xf32>, vector<2x384xf32> -> vector<2x384xf32>
    %67 = vector.extract_strided_slice %66 {offsets = [0, 0], sizes = [2, 64], strides = [1, 1]} : vector<2x384xf32> to vector<2x64xf32>
    %68 = arith.addf %67, %3 : vector<2x64xf32>
    %69 = arith.negf %68 : vector<2x64xf32>
    %70 = math.exp %69 : vector<2x64xf32>
    %cst_22 = arith.constant 1.000000e+00 : f32
    %71 = vector.broadcast %cst_22 : f32 to vector<2x64xf32>
    %72 = arith.addf %71, %70 : vector<2x64xf32>
    %73 = arith.divf %71, %72 : vector<2x64xf32>
    %74 = vector.extract_strided_slice %66 {offsets = [0, 128], sizes = [2, 64], strides = [1, 1]} : vector<2x384xf32> to vector<2x64xf32>
    %75 = arith.addf %74, %6 : vector<2x64xf32>
    %76 = arith.negf %75 : vector<2x64xf32>
    %77 = math.exp %76 : vector<2x64xf32>
    %cst_23 = arith.constant 1.000000e+00 : f32
    %78 = vector.broadcast %cst_23 : f32 to vector<2x64xf32>
    %79 = arith.addf %78, %77 : vector<2x64xf32>
    %80 = arith.divf %78, %79 : vector<2x64xf32>
    %81 = vector.extract_strided_slice %66 {offsets = [0, 256], sizes = [2, 64], strides = [1, 1]} : vector<2x384xf32> to vector<2x64xf32>
    %82 = arith.addf %81, %9 : vector<2x64xf32>
    %83 = arith.mulf %73, %82 : vector<2x64xf32>
    %84 = arith.addf %12, %83 : vector<2x64xf32>
    %85 = math.tanh %84 : vector<2x64xf32>
    %cst_24 = arith.constant 1.000000e+00 : f32
    %86 = vector.broadcast %cst_24 : f32 to vector<2x64xf32>
    %87 = arith.subf %86, %80 : vector<2x64xf32>
    %88 = arith.mulf %87, %85 : vector<2x64xf32>
    %89 = arith.mulf %80, %64 : vector<2x64xf32>
    %90 = arith.addf %88, %89 : vector<2x64xf32>
    %c4 = arith.constant 4 : index
    %c0_25 = arith.constant 0 : index
    %91 = vector.load %arg11[%c4, %c0_25] : memref<16x64xf32, #tpu.memory_space<vmem>>, vector<2x64xf32>
    tpu.vector_store %arg11[%c4, %c0_25], %90 {strides = array<i32>} : memref<16x64xf32, #tpu.memory_space<vmem>>, vector<2x64xf32>,
    %cst_26 = arith.constant dense<0.000000e+00> : vector<2x384xf32>
    %92 = tpu.matmul %90, %0, %cst_26 {dimension_numbers = #tpu.dot_dimension_numbers<[1], [0], [0], [1], [0, 0, 1, 1], [], []>} : vector<2x64xf32>, vector<64x384xf32>, vector<2x384xf32> -> vector<2x384xf32>
    %93 = vector.extract_strided_slice %92 {offsets = [0, 0], sizes = [2, 64], strides = [1, 1]} : vector<2x384xf32> to vector<2x64xf32>
    %94 = arith.addf %93, %3 : vector<2x64xf32>
    %95 = arith.negf %94 : vector<2x64xf32>
    %96 = math.exp %95 : vector<2x64xf32>
    %cst_27 = arith.constant 1.000000e+00 : f32
    %97 = vector.broadcast %cst_27 : f32 to vector<2x64xf32>
    %98 = arith.addf %97, %96 : vector<2x64xf32>
    %99 = arith.divf %97, %98 : vector<2x64xf32>
    %100 = vector.extract_strided_slice %92 {offsets = [0, 128], sizes = [2, 64], strides = [1, 1]} : vector<2x384xf32> to vector<2x64xf32>
    %101 = arith.addf %100, %6 : vector<2x64xf32>
    %102 = arith.negf %101 : vector<2x64xf32>
    %103 = math.exp %102 : vector<2x64xf32>
    %cst_28 = arith.constant 1.000000e+00 : f32
    %104 = vector.broadcast %cst_28 : f32 to vector<2x64xf32>
    %105 = arith.addf %104, %103 : vector<2x64xf32>
    %106 = arith.divf %104, %105 : vector<2x64xf32>
    %107 = vector.extract_strided_slice %92 {offsets = [0, 256], sizes = [2, 64], strides = [1, 1]} : vector<2x384xf32> to vector<2x64xf32>
    %108 = arith.addf %107, %9 : vector<2x64xf32>
    %109 = arith.mulf %99, %108 : vector<2x64xf32>
    %110 = arith.addf %12, %109 : vector<2x64xf32>
    %111 = math.tanh %110 : vector<2x64xf32>
    %cst_29 = arith.constant 1.000000e+00 : f32
    %112 = vector.broadcast %cst_29 : f32 to vector<2x64xf32>
    %113 = arith.subf %112, %106 : vector<2x64xf32>
    %114 = arith.mulf %113, %111 : vector<2x64xf32>
    %115 = arith.mulf %106, %90 : vector<2x64xf32>
    %116 = arith.addf %114, %115 : vector<2x64xf32>
    %c6 = arith.constant 6 : index
    %c0_30 = arith.constant 0 : index
    %117 = vector.load %arg11[%c6, %c0_30] : memref<16x64xf32, #tpu.memory_space<vmem>>, vector<2x64xf32>
    tpu.vector_store %arg11[%c6, %c0_30], %116 {strides = array<i32>} : memref<16x64xf32, #tpu.memory_space<vmem>>, vector<2x64xf32>,
    %cst_31 = arith.constant dense<0.000000e+00> : vector<2x384xf32>
    %118 = tpu.matmul %116, %0, %cst_31 {dimension_numbers = #tpu.dot_dimension_numbers<[1], [0], [0], [1], [0, 0, 1, 1], [], []>} : vector<2x64xf32>, vector<64x384xf32>, vector<2x384xf32> -> vector<2x384xf32>
    %119 = vector.extract_strided_slice %118 {offsets = [0, 0], sizes = [2, 64], strides = [1, 1]} : vector<2x384xf32> to vector<2x64xf32>
    %120 = arith.addf %119, %3 : vector<2x64xf32>
    %121 = arith.negf %120 : vector<2x64xf32>
    %122 = math.exp %121 : vector<2x64xf32>
    %cst_32 = arith.constant 1.000000e+00 : f32
    %123 = vector.broadcast %cst_32 : f32 to vector<2x64xf32>
    %124 = arith.addf %123, %122 : vector<2x64xf32>
    %125 = arith.divf %123, %124 : vector<2x64xf32>
    %126 = vector.extract_strided_slice %118 {offsets = [0, 128], sizes = [2, 64], strides = [1, 1]} : vector<2x384xf32> to vector<2x64xf32>
    %127 = arith.addf %126, %6 : vector<2x64xf32>
    %128 = arith.negf %127 : vector<2x64xf32>
    %129 = math.exp %128 : vector<2x64xf32>
    %cst_33 = arith.constant 1.000000e+00 : f32
    %130 = vector.broadcast %cst_33 : f32 to vector<2x64xf32>
    %131 = arith.addf %130, %129 : vector<2x64xf32>
    %132 = arith.divf %130, %131 : vector<2x64xf32>
    %133 = vector.extract_strided_slice %118 {offsets = [0, 256], sizes = [2, 64], strides = [1, 1]} : vector<2x384xf32> to vector<2x64xf32>
    %134 = arith.addf %133, %9 : vector<2x64xf32>
    %135 = arith.mulf %125, %134 : vector<2x64xf32>
    %136 = arith.addf %12, %135 : vector<2x64xf32>
    %137 = math.tanh %136 : vector<2x64xf32>
    %cst_34 = arith.constant 1.000000e+00 : f32
    %138 = vector.broadcast %cst_34 : f32 to vector<2x64xf32>
    %139 = arith.subf %138, %132 : vector<2x64xf32>
    %140 = arith.mulf %139, %137 : vector<2x64xf32>
    %141 = arith.mulf %132, %116 : vector<2x64xf32>
    %142 = arith.addf %140, %141 : vector<2x64xf32>
    %c8 = arith.constant 8 : index
    %c0_35 = arith.constant 0 : index
    %143 = vector.load %arg11[%c8, %c0_35] : memref<16x64xf32, #tpu.memory_space<vmem>>, vector<2x64xf32>
    tpu.vector_store %arg11[%c8, %c0_35], %142 {strides = array<i32>} : memref<16x64xf32, #tpu.memory_space<vmem>>, vector<2x64xf32>,
    %cst_36 = arith.constant dense<0.000000e+00> : vector<2x384xf32>
    %144 = tpu.matmul %142, %0, %cst_36 {dimension_numbers = #tpu.dot_dimension_numbers<[1], [0], [0], [1], [0, 0, 1, 1], [], []>} : vector<2x64xf32>, vector<64x384xf32>, vector<2x384xf32> -> vector<2x384xf32>
    %145 = vector.extract_strided_slice %144 {offsets = [0, 0], sizes = [2, 64], strides = [1, 1]} : vector<2x384xf32> to vector<2x64xf32>
    %146 = arith.addf %145, %3 : vector<2x64xf32>
    %147 = arith.negf %146 : vector<2x64xf32>
    %148 = math.exp %147 : vector<2x64xf32>
    %cst_37 = arith.constant 1.000000e+00 : f32
    %149 = vector.broadcast %cst_37 : f32 to vector<2x64xf32>
    %150 = arith.addf %149, %148 : vector<2x64xf32>
    %151 = arith.divf %149, %150 : vector<2x64xf32>
    %152 = vector.extract_strided_slice %144 {offsets = [0, 128], sizes = [2, 64], strides = [1, 1]} : vector<2x384xf32> to vector<2x64xf32>
    %153 = arith.addf %152, %6 : vector<2x64xf32>
    %154 = arith.negf %153 : vector<2x64xf32>
    %155 = math.exp %154 : vector<2x64xf32>
    %cst_38 = arith.constant 1.000000e+00 : f32
    %156 = vector.broadcast %cst_38 : f32 to vector<2x64xf32>
    %157 = arith.addf %156, %155 : vector<2x64xf32>
    %158 = arith.divf %156, %157 : vector<2x64xf32>
    %159 = vector.extract_strided_slice %144 {offsets = [0, 256], sizes = [2, 64], strides = [1, 1]} : vector<2x384xf32> to vector<2x64xf32>
    %160 = arith.addf %159, %9 : vector<2x64xf32>
    %161 = arith.mulf %151, %160 : vector<2x64xf32>
    %162 = arith.addf %12, %161 : vector<2x64xf32>
    %163 = math.tanh %162 : vector<2x64xf32>
    %cst_39 = arith.constant 1.000000e+00 : f32
    %164 = vector.broadcast %cst_39 : f32 to vector<2x64xf32>
    %165 = arith.subf %164, %158 : vector<2x64xf32>
    %166 = arith.mulf %165, %163 : vector<2x64xf32>
    %167 = arith.mulf %158, %142 : vector<2x64xf32>
    %168 = arith.addf %166, %167 : vector<2x64xf32>
    %c10 = arith.constant 10 : index
    %c0_40 = arith.constant 0 : index
    %169 = vector.load %arg11[%c10, %c0_40] : memref<16x64xf32, #tpu.memory_space<vmem>>, vector<2x64xf32>
    tpu.vector_store %arg11[%c10, %c0_40], %168 {strides = array<i32>} : memref<16x64xf32, #tpu.memory_space<vmem>>, vector<2x64xf32>,
    %cst_41 = arith.constant dense<0.000000e+00> : vector<2x384xf32>
    %170 = tpu.matmul %168, %0, %cst_41 {dimension_numbers = #tpu.dot_dimension_numbers<[1], [0], [0], [1], [0, 0, 1, 1], [], []>} : vector<2x64xf32>, vector<64x384xf32>, vector<2x384xf32> -> vector<2x384xf32>
    %171 = vector.extract_strided_slice %170 {offsets = [0, 0], sizes = [2, 64], strides = [1, 1]} : vector<2x384xf32> to vector<2x64xf32>
    %172 = arith.addf %171, %3 : vector<2x64xf32>
    %173 = arith.negf %172 : vector<2x64xf32>
    %174 = math.exp %173 : vector<2x64xf32>
    %cst_42 = arith.constant 1.000000e+00 : f32
    %175 = vector.broadcast %cst_42 : f32 to vector<2x64xf32>
    %176 = arith.addf %175, %174 : vector<2x64xf32>
    %177 = arith.divf %175, %176 : vector<2x64xf32>
    %178 = vector.extract_strided_slice %170 {offsets = [0, 128], sizes = [2, 64], strides = [1, 1]} : vector<2x384xf32> to vector<2x64xf32>
    %179 = arith.addf %178, %6 : vector<2x64xf32>
    %180 = arith.negf %179 : vector<2x64xf32>
    %181 = math.exp %180 : vector<2x64xf32>
    %cst_43 = arith.constant 1.000000e+00 : f32
    %182 = vector.broadcast %cst_43 : f32 to vector<2x64xf32>
    %183 = arith.addf %182, %181 : vector<2x64xf32>
    %184 = arith.divf %182, %183 : vector<2x64xf32>
    %185 = vector.extract_strided_slice %170 {offsets = [0, 256], sizes = [2, 64], strides = [1, 1]} : vector<2x384xf32> to vector<2x64xf32>
    %186 = arith.addf %185, %9 : vector<2x64xf32>
    %187 = arith.mulf %177, %186 : vector<2x64xf32>
    %188 = arith.addf %12, %187 : vector<2x64xf32>
    %189 = math.tanh %188 : vector<2x64xf32>
    %cst_44 = arith.constant 1.000000e+00 : f32
    %190 = vector.broadcast %cst_44 : f32 to vector<2x64xf32>
    %191 = arith.subf %190, %184 : vector<2x64xf32>
    %192 = arith.mulf %191, %189 : vector<2x64xf32>
    %193 = arith.mulf %184, %168 : vector<2x64xf32>
    %194 = arith.addf %192, %193 : vector<2x64xf32>
    %c12 = arith.constant 12 : index
    %c0_45 = arith.constant 0 : index
    %195 = vector.load %arg11[%c12, %c0_45] : memref<16x64xf32, #tpu.memory_space<vmem>>, vector<2x64xf32>
    tpu.vector_store %arg11[%c12, %c0_45], %194 {strides = array<i32>} : memref<16x64xf32, #tpu.memory_space<vmem>>, vector<2x64xf32>,
    %cst_46 = arith.constant dense<0.000000e+00> : vector<2x384xf32>
    %196 = tpu.matmul %194, %0, %cst_46 {dimension_numbers = #tpu.dot_dimension_numbers<[1], [0], [0], [1], [0, 0, 1, 1], [], []>} : vector<2x64xf32>, vector<64x384xf32>, vector<2x384xf32> -> vector<2x384xf32>
    %197 = vector.extract_strided_slice %196 {offsets = [0, 0], sizes = [2, 64], strides = [1, 1]} : vector<2x384xf32> to vector<2x64xf32>
    %198 = arith.addf %197, %3 : vector<2x64xf32>
    %199 = arith.negf %198 : vector<2x64xf32>
    %200 = math.exp %199 : vector<2x64xf32>
    %cst_47 = arith.constant 1.000000e+00 : f32
    %201 = vector.broadcast %cst_47 : f32 to vector<2x64xf32>
    %202 = arith.addf %201, %200 : vector<2x64xf32>
    %203 = arith.divf %201, %202 : vector<2x64xf32>
    %204 = vector.extract_strided_slice %196 {offsets = [0, 128], sizes = [2, 64], strides = [1, 1]} : vector<2x384xf32> to vector<2x64xf32>
    %205 = arith.addf %204, %6 : vector<2x64xf32>
    %206 = arith.negf %205 : vector<2x64xf32>
    %207 = math.exp %206 : vector<2x64xf32>
    %cst_48 = arith.constant 1.000000e+00 : f32
    %208 = vector.broadcast %cst_48 : f32 to vector<2x64xf32>
    %209 = arith.addf %208, %207 : vector<2x64xf32>
    %210 = arith.divf %208, %209 : vector<2x64xf32>
    %211 = vector.extract_strided_slice %196 {offsets = [0, 256], sizes = [2, 64], strides = [1, 1]} : vector<2x384xf32> to vector<2x64xf32>
    %212 = arith.addf %211, %9 : vector<2x64xf32>
    %213 = arith.mulf %203, %212 : vector<2x64xf32>
    %214 = arith.addf %12, %213 : vector<2x64xf32>
    %215 = math.tanh %214 : vector<2x64xf32>
    %cst_49 = arith.constant 1.000000e+00 : f32
    %216 = vector.broadcast %cst_49 : f32 to vector<2x64xf32>
    %217 = arith.subf %216, %210 : vector<2x64xf32>
    %218 = arith.mulf %217, %215 : vector<2x64xf32>
    %219 = arith.mulf %210, %194 : vector<2x64xf32>
    %220 = arith.addf %218, %219 : vector<2x64xf32>
    %c14 = arith.constant 14 : index
    %c0_50 = arith.constant 0 : index
    %221 = vector.load %arg11[%c14, %c0_50] : memref<16x64xf32, #tpu.memory_space<vmem>>, vector<2x64xf32>
    tpu.vector_store %arg11[%c14, %c0_50], %220 {strides = array<i32>} : memref<16x64xf32, #tpu.memory_space<vmem>>, vector<2x64xf32>,
    %c0_51 = arith.constant 0 : index
    %c0_52 = arith.constant 0 : index
    %222 = vector.load %arg11[%c0_51, %c0_52] : memref<16x64xf32, #tpu.memory_space<vmem>>, vector<16x64xf32>
    %c0_53 = arith.constant 0 : index
    %c0_54 = arith.constant 0 : index
    %223 = vector.load %arg7[%c0_53, %c0_54] : memref<64x3xf32, #tpu.memory_space<vmem>>, vector<64x3xf32>
    %cst_55 = arith.constant dense<0.000000e+00> : vector<16x3xf32>
    %224 = tpu.matmul %222, %223, %cst_55 {dimension_numbers = #tpu.dot_dimension_numbers<[1], [0], [0], [1], [0, 0, 1, 1], [], []>} : vector<16x64xf32>, vector<64x3xf32>, vector<16x3xf32> -> vector<16x3xf32>
    %c0_56 = arith.constant 0 : index
    %c0_57 = arith.constant 0 : index
    %225 = vector.load %arg8[%c0_56, %c0_57] : memref<64x3xf32, #tpu.memory_space<vmem>>, vector<64x3xf32>
    %cst_58 = arith.constant dense<0.000000e+00> : vector<16x3xf32>
    %226 = tpu.matmul %222, %225, %cst_58 {dimension_numbers = #tpu.dot_dimension_numbers<[1], [0], [0], [1], [0, 0, 1, 1], [], []>} : vector<16x64xf32>, vector<64x3xf32>, vector<16x3xf32> -> vector<16x3xf32>
    %c0_59 = arith.constant 0 : index
    %c0_60 = arith.constant 0 : index
    %227 = vector.load %arg9[%c0_59, %c0_60] : memref<1x3xf32, #tpu.memory_space<vmem>>, vector<1x3xf32>
    %228 = vector.extract_strided_slice %224 {offsets = [0, 0], sizes = [2, 3], strides = [1, 1]} : vector<16x3xf32> to vector<2x3xf32>
    %229 = vector.extract_strided_slice %226 {offsets = [14, 0], sizes = [2, 3], strides = [1, 1]} : vector<16x3xf32> to vector<2x3xf32>
    %230 = arith.addf %228, %229 : vector<2x3xf32>
    %231 = vector.broadcast %227 : vector<1x3xf32> to vector<2x3xf32>
    %232 = arith.addf %230, %231 : vector<2x3xf32>
    %233 = math.tanh %232 : vector<2x3xf32>
    %c0_61 = arith.constant 0 : index
    %c0_62 = arith.constant 0 : index
    %c0_63 = arith.constant 0 : index
    %234 = vector.load %arg10[%c0_61, %c0_62, %c0_63] : memref<8x2x3xf32, #tpu.memory_space<vmem>>, vector<1x2x3xf32>
    %235 = vector.shape_cast %234 : vector<1x2x3xf32> to vector<2x3xf32>
    %236 = vector.shape_cast %233 : vector<2x3xf32> to vector<1x2x3xf32>
    tpu.vector_store %arg10[%c0_61, %c0_62, %c0_63], %236 {strides = array<i32>} : memref<8x2x3xf32, #tpu.memory_space<vmem>>, vector<1x2x3xf32>,
    %237 = vector.extract_strided_slice %224 {offsets = [2, 0], sizes = [2, 3], strides = [1, 1]} : vector<16x3xf32> to vector<2x3xf32>
    %238 = vector.extract_strided_slice %226 {offsets = [12, 0], sizes = [2, 3], strides = [1, 1]} : vector<16x3xf32> to vector<2x3xf32>
    %239 = arith.addf %237, %238 : vector<2x3xf32>
    %240 = vector.broadcast %227 : vector<1x3xf32> to vector<2x3xf32>
    %241 = arith.addf %239, %240 : vector<2x3xf32>
    %242 = math.tanh %241 : vector<2x3xf32>
    %c1 = arith.constant 1 : index
    %c0_64 = arith.constant 0 : index
    %c0_65 = arith.constant 0 : index
    %243 = vector.load %arg10[%c1, %c0_64, %c0_65] : memref<8x2x3xf32, #tpu.memory_space<vmem>>, vector<1x2x3xf32>
    %244 = vector.shape_cast %243 : vector<1x2x3xf32> to vector<2x3xf32>
    %245 = vector.shape_cast %242 : vector<2x3xf32> to vector<1x2x3xf32>
    tpu.vector_store %arg10[%c1, %c0_64, %c0_65], %245 {strides = array<i32>} : memref<8x2x3xf32, #tpu.memory_space<vmem>>, vector<1x2x3xf32>,
    %246 = vector.extract_strided_slice %224 {offsets = [4, 0], sizes = [2, 3], strides = [1, 1]} : vector<16x3xf32> to vector<2x3xf32>
    %247 = vector.extract_strided_slice %226 {offsets = [10, 0], sizes = [2, 3], strides = [1, 1]} : vector<16x3xf32> to vector<2x3xf32>
    %248 = arith.addf %246, %247 : vector<2x3xf32>
    %249 = vector.broadcast %227 : vector<1x3xf32> to vector<2x3xf32>
    %250 = arith.addf %248, %249 : vector<2x3xf32>
    %251 = math.tanh %250 : vector<2x3xf32>
    %c2_66 = arith.constant 2 : index
    %c0_67 = arith.constant 0 : index
    %c0_68 = arith.constant 0 : index
    %252 = vector.load %arg10[%c2_66, %c0_67, %c0_68] : memref<8x2x3xf32, #tpu.memory_space<vmem>>, vector<1x2x3xf32>
    %253 = vector.shape_cast %252 : vector<1x2x3xf32> to vector<2x3xf32>
    %254 = vector.shape_cast %251 : vector<2x3xf32> to vector<1x2x3xf32>
    tpu.vector_store %arg10[%c2_66, %c0_67, %c0_68], %254 {strides = array<i32>} : memref<8x2x3xf32, #tpu.memory_space<vmem>>, vector<1x2x3xf32>,
    %255 = vector.extract_strided_slice %224 {offsets = [6, 0], sizes = [2, 3], strides = [1, 1]} : vector<16x3xf32> to vector<2x3xf32>
    %256 = vector.extract_strided_slice %226 {offsets = [8, 0], sizes = [2, 3], strides = [1, 1]} : vector<16x3xf32> to vector<2x3xf32>
    %257 = arith.addf %255, %256 : vector<2x3xf32>
    %258 = vector.broadcast %227 : vector<1x3xf32> to vector<2x3xf32>
    %259 = arith.addf %257, %258 : vector<2x3xf32>
    %260 = math.tanh %259 : vector<2x3xf32>
    %c3 = arith.constant 3 : index
    %c0_69 = arith.constant 0 : index
    %c0_70 = arith.constant 0 : index
    %261 = vector.load %arg10[%c3, %c0_69, %c0_70] : memref<8x2x3xf32, #tpu.memory_space<vmem>>, vector<1x2x3xf32>
    %262 = vector.shape_cast %261 : vector<1x2x3xf32> to vector<2x3xf32>
    %263 = vector.shape_cast %260 : vector<2x3xf32> to vector<1x2x3xf32>
    tpu.vector_store %arg10[%c3, %c0_69, %c0_70], %263 {strides = array<i32>} : memref<8x2x3xf32, #tpu.memory_space<vmem>>, vector<1x2x3xf32>,
    %264 = vector.extract_strided_slice %224 {offsets = [8, 0], sizes = [2, 3], strides = [1, 1]} : vector<16x3xf32> to vector<2x3xf32>
    %265 = vector.extract_strided_slice %226 {offsets = [6, 0], sizes = [2, 3], strides = [1, 1]} : vector<16x3xf32> to vector<2x3xf32>
    %266 = arith.addf %264, %265 : vector<2x3xf32>
    %267 = vector.broadcast %227 : vector<1x3xf32> to vector<2x3xf32>
    %268 = arith.addf %266, %267 : vector<2x3xf32>
    %269 = math.tanh %268 : vector<2x3xf32>
    %c4_71 = arith.constant 4 : index
    %c0_72 = arith.constant 0 : index
    %c0_73 = arith.constant 0 : index
    %270 = vector.load %arg10[%c4_71, %c0_72, %c0_73] : memref<8x2x3xf32, #tpu.memory_space<vmem>>, vector<1x2x3xf32>
    %271 = vector.shape_cast %270 : vector<1x2x3xf32> to vector<2x3xf32>
    %272 = vector.shape_cast %269 : vector<2x3xf32> to vector<1x2x3xf32>
    tpu.vector_store %arg10[%c4_71, %c0_72, %c0_73], %272 {strides = array<i32>} : memref<8x2x3xf32, #tpu.memory_space<vmem>>, vector<1x2x3xf32>,
    %273 = vector.extract_strided_slice %224 {offsets = [10, 0], sizes = [2, 3], strides = [1, 1]} : vector<16x3xf32> to vector<2x3xf32>
    %274 = vector.extract_strided_slice %226 {offsets = [4, 0], sizes = [2, 3], strides = [1, 1]} : vector<16x3xf32> to vector<2x3xf32>
    %275 = arith.addf %273, %274 : vector<2x3xf32>
    %276 = vector.broadcast %227 : vector<1x3xf32> to vector<2x3xf32>
    %277 = arith.addf %275, %276 : vector<2x3xf32>
    %278 = math.tanh %277 : vector<2x3xf32>
    %c5 = arith.constant 5 : index
    %c0_74 = arith.constant 0 : index
    %c0_75 = arith.constant 0 : index
    %279 = vector.load %arg10[%c5, %c0_74, %c0_75] : memref<8x2x3xf32, #tpu.memory_space<vmem>>, vector<1x2x3xf32>
    %280 = vector.shape_cast %279 : vector<1x2x3xf32> to vector<2x3xf32>
    %281 = vector.shape_cast %278 : vector<2x3xf32> to vector<1x2x3xf32>
    tpu.vector_store %arg10[%c5, %c0_74, %c0_75], %281 {strides = array<i32>} : memref<8x2x3xf32, #tpu.memory_space<vmem>>, vector<1x2x3xf32>,
    %282 = vector.extract_strided_slice %224 {offsets = [12, 0], sizes = [2, 3], strides = [1, 1]} : vector<16x3xf32> to vector<2x3xf32>
    %283 = vector.extract_strided_slice %226 {offsets = [2, 0], sizes = [2, 3], strides = [1, 1]} : vector<16x3xf32> to vector<2x3xf32>
    %284 = arith.addf %282, %283 : vector<2x3xf32>
    %285 = vector.broadcast %227 : vector<1x3xf32> to vector<2x3xf32>
    %286 = arith.addf %284, %285 : vector<2x3xf32>
    %287 = math.tanh %286 : vector<2x3xf32>
    %c6_76 = arith.constant 6 : index
    %c0_77 = arith.constant 0 : index
    %c0_78 = arith.constant 0 : index
    %288 = vector.load %arg10[%c6_76, %c0_77, %c0_78] : memref<8x2x3xf32, #tpu.memory_space<vmem>>, vector<1x2x3xf32>
    %289 = vector.shape_cast %288 : vector<1x2x3xf32> to vector<2x3xf32>
    %290 = vector.shape_cast %287 : vector<2x3xf32> to vector<1x2x3xf32>
    tpu.vector_store %arg10[%c6_76, %c0_77, %c0_78], %290 {strides = array<i32>} : memref<8x2x3xf32, #tpu.memory_space<vmem>>, vector<1x2x3xf32>,
    %291 = vector.extract_strided_slice %224 {offsets = [14, 0], sizes = [2, 3], strides = [1, 1]} : vector<16x3xf32> to vector<2x3xf32>
    %292 = vector.extract_strided_slice %226 {offsets = [0, 0], sizes = [2, 3], strides = [1, 1]} : vector<16x3xf32> to vector<2x3xf32>
    %293 = arith.addf %291, %292 : vector<2x3xf32>
    %294 = vector.broadcast %227 : vector<1x3xf32> to vector<2x3xf32>
    %295 = arith.addf %293, %294 : vector<2x3xf32>
    %296 = math.tanh %295 : vector<2x3xf32>
    %c7 = arith.constant 7 : index
    %c0_79 = arith.constant 0 : index
    %c0_80 = arith.constant 0 : index
    %297 = vector.load %arg10[%c7, %c0_79, %c0_80] : memref<8x2x3xf32, #tpu.memory_space<vmem>>, vector<1x2x3xf32>
    %298 = vector.shape_cast %297 : vector<1x2x3xf32> to vector<2x3xf32>
    %299 = vector.shape_cast %296 : vector<2x3xf32> to vector<1x2x3xf32>
    tpu.vector_store %arg10[%c7, %c0_79, %c0_80], %299 {strides = array<i32>} : memref<8x2x3xf32, #tpu.memory_space<vmem>>, vector<1x2x3xf32>,
    return
  }
  func.func @transform_0(%arg0: i32) -> (i32, i32) {
    %c0_i32 = arith.constant 0 : i32
    %c0_i32_0 = arith.constant 0 : i32
    return %arg0, %c0_i32 : i32, i32
  }
  func.func @transform_1(%arg0: i32) -> (i32, i32) {
    %c0_i32 = arith.constant 0 : i32
    %c0_i32_0 = arith.constant 0 : i32
    %c0_i32_1 = arith.constant 0 : i32
    return %c0_i32, %c0_i32_0 : i32, i32
  }
  func.func @transform_2(%arg0: i32) -> (i32, i32) {
    %c0_i32 = arith.constant 0 : i32
    %c0_i32_0 = arith.constant 0 : i32
    %c0_i32_1 = arith.constant 0 : i32
    return %c0_i32, %c0_i32_0 : i32, i32
  }
  func.func @transform_3(%arg0: i32) -> (i32, i32) {
    %c0_i32 = arith.constant 0 : i32
    %c0_i32_0 = arith.constant 0 : i32
    %c0_i32_1 = arith.constant 0 : i32
    return %c0_i32, %c0_i32_0 : i32, i32
  }
  func.func @transform_4(%arg0: i32) -> (i32, i32) {
    %c0_i32 = arith.constant 0 : i32
    %c0_i32_0 = arith.constant 0 : i32
    %c0_i32_1 = arith.constant 0 : i32
    return %c0_i32, %c0_i32_0 : i32, i32
  }
  func.func @transform_5(%arg0: i32) -> (i32, i32) {
    %c0_i32 = arith.constant 0 : i32
    %c0_i32_0 = arith.constant 0 : i32
    %c0_i32_1 = arith.constant 0 : i32
    return %c0_i32, %c0_i32_0 : i32, i32
  }
  func.func @transform_6(%arg0: i32) -> (i32, i32) {
    %c0_i32 = arith.constant 0 : i32
    %c0_i32_0 = arith.constant 0 : i32
    %c0_i32_1 = arith.constant 0 : i32
    return %c0_i32, %c0_i32_0 : i32, i32
  }
  func.func @transform_7(%arg0: i32) -> (i32, i32) {
    %c0_i32 = arith.constant 0 : i32
    %c0_i32_0 = arith.constant 0 : i32
    %c0_i32_1 = arith.constant 0 : i32
    return %c0_i32, %c0_i32_0 : i32, i32
  }
  func.func @transform_8(%arg0: i32) -> (i32, i32) {
    %c0_i32 = arith.constant 0 : i32
    %c0_i32_0 = arith.constant 0 : i32
    %c0_i32_1 = arith.constant 0 : i32
    return %c0_i32, %c0_i32_0 : i32, i32
  }
  func.func @transform_9(%arg0: i32) -> (i32, i32, i32) {
    %c0_i32 = arith.constant 0 : i32
    %c0_i32_0 = arith.constant 0 : i32
    %c0_i32_1 = arith.constant 0 : i32
    return %c0_i32, %arg0, %c0_i32_0 : i32, i32, i32
  }
}

</mosaic_0001>

<llo_original>
// kernel: bond_vector_decoder.1
$region0: #{bond_vector_decoder.1}
  #allocation0 [shape = 'u32[]', space=smem, size = 0x4, offset = 0x4, fixed_abs, tag = 'smem constant byte address 0x4 - core index']
  #allocation1 [shape = 'u32[144,128]{1,0:T(1,128)}', space=vmem, size = 0x12000, scoped, tag = 'internal scratch']
  #allocation2 [shape = 'f32[16,64]{1,0:T(8,128)}', space=vmem, size = 0x2000, scoped, tag = 'scratch operand']
  %s0 = inlined_call_operand.vmem [shape: f32[2,64], index: 0, kind: input, shape index: {}]
  %s1 = inlined_call_operand.vmem [shape: f32[64,384], index: 1, kind: input, shape index: {}]
  %s2 = inlined_call_operand.vmem [shape: f32[1,64], index: 2, kind: input, shape index: {}]
  %s3 = inlined_call_operand.vmem [shape: f32[1,64], index: 3, kind: input, shape index: {}]
  %s4 = inlined_call_operand.vmem [shape: f32[1,64], index: 4, kind: input, shape index: {}]
  %s5 = inlined_call_operand.vmem [shape: f32[1,64], index: 5, kind: input, shape index: {}]
  %s6 = inlined_call_operand.vmem [shape: f32[64,3], index: 6, kind: input, shape index: {}]
  %s7 = inlined_call_operand.vmem [shape: f32[64,3], index: 7, kind: input, shape index: {}]
  %s8 = inlined_call_operand.vmem [shape: f32[1,3], index: 8, kind: input, shape index: {}]
  %s9 = inlined_call_operand.vmem [shape: f32[8,2,3], index: 9, kind: output, shape index: {}]
  %s10 = sld [smem:[#allocation0]]
  $region46: #{bond_vector_decoder.1} parent=0
    _
  %s12 = ssub.s32 1, %s10
  %s13 = scalar_select 0, %s12, %s10
  // Predicated region
  $region2: #{bond_vector_decoder.1} parent=0 // pred_check
    _
  $region3: #{bond_vector_decoder.1} parent=0 // pred_check_branch
    %15 = sbr.rel (0) target = $region5
  $region4: #{bond_vector_decoder.1} parent=0 // pred_region
    _
  $region5: #{bond_vector_decoder.1} parent=0 // pred_fallthru
    _
  // Predicated region
  $region6: #{bond_vector_decoder.1} parent=0 // pred_check
    _
  $region7: #{bond_vector_decoder.1} parent=0 // pred_check_branch
    %17 = sbr.rel (0) target = $region9
  $region8: #{bond_vector_decoder.1} parent=0 // pred_region
    _
  $region9: #{bond_vector_decoder.1} parent=0 // pred_fallthru
    _
  // Predicated region
  $region10: #{bond_vector_decoder.1} parent=0 // pred_check
    _
  $region11: #{bond_vector_decoder.1} parent=0 // pred_check_branch
    %19 = sbr.rel (0) target = $region13
  $region12: #{bond_vector_decoder.1} parent=0 // pred_region
    _
  $region13: #{bond_vector_decoder.1} parent=0 // pred_fallthru
    _
  // Predicated region
  $region14: #{bond_vector_decoder.1} parent=0 // pred_check
    _
  $region15: #{bond_vector_decoder.1} parent=0 // pred_check_branch
    %21 = sbr.rel (0) target = $region17
  $region16: #{bond_vector_decoder.1} parent=0 // pred_region
    _
  $region17: #{bond_vector_decoder.1} parent=0 // pred_fallthru
    _
  // Predicated region
  $region18: #{bond_vector_decoder.1} parent=0 // pred_check
    _
  $region19: #{bond_vector_decoder.1} parent=0 // pred_check_branch
    %23 = sbr.rel (0) target = $region21
  $region20: #{bond_vector_decoder.1} parent=0 // pred_region
    _
  $region21: #{bond_vector_decoder.1} parent=0 // pred_fallthru
    _
  // Predicated region
  $region22: #{bond_vector_decoder.1} parent=0 // pred_check
    _
  $region23: #{bond_vector_decoder.1} parent=0 // pred_check_branch
    %25 = sbr.rel (0) target = $region25
  $region24: #{bond_vector_decoder.1} parent=0 // pred_region
    _
  $region25: #{bond_vector_decoder.1} parent=0 // pred_fallthru
    _
  // Predicated region
  $region26: #{bond_vector_decoder.1} parent=0 // pred_check
    _
  $region27: #{bond_vector_decoder.1} parent=0 // pred_check_branch
    %27 = sbr.rel (0) target = $region29
  $region28: #{bond_vector_decoder.1} parent=0 // pred_region
    _
  $region29: #{bond_vector_decoder.1} parent=0 // pred_fallthru
    _
  // Predicated region
  $region30: #{bond_vector_decoder.1} parent=0 // pred_check
    _
  $region31: #{bond_vector_decoder.1} parent=0 // pred_check_branch
    %29 = sbr.rel (0) target = $region33
  $region32: #{bond_vector_decoder.1} parent=0 // pred_region
    _
  $region33: #{bond_vector_decoder.1} parent=0 // pred_fallthru
    _
  // Predicated region
  $region34: #{bond_vector_decoder.1} parent=0 // pred_check
    _
  $region35: #{bond_vector_decoder.1} parent=0 // pred_check_branch
    %31 = sbr.rel (0) target = $region37
  $region36: #{bond_vector_decoder.1} parent=0 // pred_region
    _
  $region37: #{bond_vector_decoder.1} parent=0 // pred_fallthru
    _
  %v32 = vld [vmem:[%s1] sm:$0xff]
  %v33 = vld [vmem:[%s1 + $0x8] sm:$0xff]
  %v34 = vld [vmem:[%s1 + $0x10] sm:$0xff]
  %v35 = vld [vmem:[%s1 + $0x18] sm:$0xff]
  %v36 = vld [vmem:[%s1 + $0x20] sm:$0xff]
  %v37 = vld [vmem:[%s1 + $0x28] sm:$0xff]
  %v38 = vld [vmem:[%s1 + $0x30] sm:$0xff]
  %v39 = vld [vmem:[%s1 + $0x38] sm:$0xff]
  %v40 = vld [vmem:[%s1 + $0x40] sm:$0xff]
  %v41 = vld [vmem:[%s1 + $0x48] sm:$0xff]
  %v42 = vld [vmem:[%s1 + $0x50] sm:$0xff]
  %v43 = vld [vmem:[%s1 + $0x58] sm:$0xff]
  %v44 = vld [vmem:[%s1 + $0x60] sm:$0xff]
  %v45 = vld [vmem:[%s1 + $0x68] sm:$0xff]
  %v46 = vld [vmem:[%s1 + $0x70] sm:$0xff]
  %v47 = vld [vmem:[%s1 + $0x78] sm:$0xff]
  %v48 = vld [vmem:[%s1 + $0x80] sm:$0xff]
  %v49 = vld [vmem:[%s1 + $0x88] sm:$0xff]
  %v50 = vld [vmem:[%s1 + $0x90] sm:$0xff]
  %v51 = vld [vmem:[%s1 + $0x98] sm:$0xff]
  %v52 = vld [vmem:[%s1 + $0xa0] sm:$0xff]
  %v53 = vld [vmem:[%s1 + $0xa8] sm:$0xff]
  %v54 = vld [vmem:[%s1 + $0xb0] sm:$0xff]
  %v55 = vld [vmem:[%s1 + $0xb8] sm:$0xff]
  %v56 = vld [vmem:[%s2] sm:$0x1]
  %v58 = vlaneseq
  %v59 = vshrl.u32 %v58, 7
  %v60 = vsub.s32 0, %v59
  %v61 = vrot.slane %v56, %v60
  %v63 = vld [vmem:[%s3] sm:$0x1]
  %v65 = vlaneseq
  %v66 = vshrl.u32 %v65, 7
  %v67 = vsub.s32 0, %v66
  %v68 = vrot.slane %v63, %v67
  %v70 = vld [vmem:[%s4] sm:$0x1]
  %v72 = vlaneseq
  %v73 = vshrl.u32 %v72, 7
  %v74 = vsub.s32 0, %v73
  %v75 = vrot.slane %v70, %v74
  %v77 = vld [vmem:[%s5] sm:$0x1]
  %v79 = vlaneseq
  %v80 = vshrl.u32 %v79, 7
  %v81 = vsub.s32 0, %v80
  %v82 = vrot.slane %v77, %v81
  %v84 = vld [vmem:[%s0] sm:$0x3]
  %vm85 = vcmask 523264
  %v87 = vsel %vm85, %v84, 0
  %89 = vmatprep.subr.mxu0 %v33
  %90 = vmatpush1.msra.mxu0 %v32
  %91 = vmatprep.subr.mxu0 %v36
  %92 = vmatpush1.msra.mxu0 %v35
  %93 = vmatprep.subr.mxu0 %v39
  %94 = vmatpush1.msra.mxu0 %v38
  %95 = vmatprep.subr.mxu0 %v42
  %96 = vmatpush1.msra.mxu0 %v41
  %97 = vmatprep.subr.mxu0 %v45
  %98 = vmatpush1.msra.mxu0 %v44
  %99 = vmatprep.subr.mxu0 %v48
  %100 = vmatpush1.msra.mxu0 %v47
  %101 = vmatprep.subr.mxu0 %v51
  %102 = vmatpush1.msra.mxu0 %v50
  %103 = vmatprep.subr.mxu0 %v54
  %104 = vmatpush1.msra.mxu0 %v53
  %105 = vmatprep.subr.mxu0 0.0
  %106 = vmatpush1.msra.mxu0 0.0
  %107 = vmatprep.subr.mxu0 0.0
  %108 = vmatpush1.msra.mxu0 0.0
  %109 = vmatprep.subr.mxu0 0.0
  %110 = vmatpush1.msra.mxu0 0.0
  %111 = vmatprep.subr.mxu0 0.0
  %112 = vmatpush1.msra.mxu0 0.0
  %113 = vmatprep.subr.mxu0 0.0
  %114 = vmatpush1.msra.mxu0 0.0
  %115 = vmatprep.subr.mxu0 0.0
  %116 = vmatpush1.msra.mxu0 0.0
  %117 = vmatprep.subr.mxu0 0.0
  %118 = vmatpush1.msra.mxu0 0.0
  %119 = vmatprep.subr.mxu0 0.0
  %120 = vmatpush1.msra.mxu0 0.0
  %121 = vmatprep.subr.mxu0 0.0
  %122 = vmatpush1.msra.mxu0 0.0
  %123 = vmatprep.subr.mxu0 0.0
  %124 = vmatpush1.msra.mxu0 0.0
  %125 = vmatprep.subr.mxu0 0.0
  %126 = vmatpush1.msra.mxu0 0.0
  %127 = vmatprep.subr.mxu0 0.0
  %128 = vmatpush1.msra.mxu0 0.0
  %129 = vmatprep.subr.mxu0 0.0
  %130 = vmatpush1.msra.mxu0 0.0
  %131 = vmatprep.subr.mxu0 0.0
  %132 = vmatpush1.msra.mxu0 0.0
  %133 = vmatprep.subr.mxu0 0.0
  %134 = vmatpush1.msra.mxu0 0.0
  %135 = vmatprep.subr.mxu0 0.0
  %136 = vmatpush1.msra.mxu0 0.0
  %137 = vmatprep.subr.mxu0 0.0
  %138 = vmatpush1.msra.mxu0 0.0
  %139 = vmatprep.subr.mxu0 0.0
  %140 = vmatpush1.msra.mxu0 0.0
  %141 = vmatprep.subr.mxu0 0.0
  %142 = vmatpush1.msra.mxu0 0.0
  %143 = vmatprep.subr.mxu0 0.0
  %144 = vmatpush1.msra.mxu0 0.0
  %145 = vmatprep.subr.mxu0 0.0
  %146 = vmatpush1.msra.mxu0 0.0
  %147 = vmatprep.subr.mxu0 0.0
  %148 = vmatpush1.msra.mxu0 0.0
  %149 = vmatprep.subr.mxu0 0.0
  %150 = vmatpush1.msra.mxu0 0.0
  %151 = vmatprep.subr.mxu0 0.0
  %152 = vmatpush1.msra.mxu0 0.0
  %153 = vmatprep.mubr.f32.mxu0 0.0
  %154 = vmatmul.mubr.f32.gmra.mrb[0].mxu0 %v87
  %v155 = vpop.f32.mrb[0].mxu0
  %v156 = vadd.f32 0.0, %v155
  %v157 = vpop.f32.mrb[0].mxu0
  %v158 = vadd.f32 0.0, %v157
  %159 = vdwg.mxu0
  %160 = vmatprep.subr.mxu0 0.0
  %161 = vmatpush1.msra.mxu0 %v34
  %162 = vmatprep.subr.mxu0 0.0
  %163 = vmatpush1.msra.mxu0 %v37
  %164 = vmatprep.subr.mxu0 0.0
  %165 = vmatpush1.msra.mxu0 %v40
  %166 = vmatprep.subr.mxu0 0.0
  %167 = vmatpush1.msra.mxu0 %v43
  %168 = vmatprep.subr.mxu0 0.0
  %169 = vmatpush1.msra.mxu0 %v46
  %170 = vmatprep.subr.mxu0 0.0
  %171 = vmatpush1.msra.mxu0 %v49
  %172 = vmatprep.subr.mxu0 0.0
  %173 = vmatpush1.msra.mxu0 %v52
  %174 = vmatprep.subr.mxu0 0.0
  %175 = vmatpush1.msra.mxu0 %v55
  %176 = vmatprep.subr.mxu0 0.0
  %177 = vmatpush1.msra.mxu0 0.0
  %178 = vmatprep.subr.mxu0 0.0
  %179 = vmatpush1.msra.mxu0 0.0
  %180 = vmatprep.subr.mxu0 0.0
  %181 = vmatpush1.msra.mxu0 0.0
  %182 = vmatprep.subr.mxu0 0.0
  %183 = vmatpush1.msra.mxu0 0.0
  %184 = vmatprep.subr.mxu0 0.0
  %185 = vmatpush1.msra.mxu0 0.0
  %186 = vmatprep.subr.mxu0 0.0
  %187 = vmatpush1.msra.mxu0 0.0
  %188 = vmatprep.subr.mxu0 0.0
  %189 = vmatpush1.msra.mxu0 0.0
  %190 = vmatprep.subr.mxu0 0.0
  %191 = vmatpush1.msra.mxu0 0.0
  %192 = vmatprep.subr.mxu0 0.0
  %193 = vmatpush1.msra.mxu0 0.0
  %194 = vmatprep.subr.mxu0 0.0
  %195 = vmatpush1.msra.mxu0 0.0
  %196 = vmatprep.subr.mxu0 0.0
  %197 = vmatpush1.msra.mxu0 0.0
  %198 = vmatprep.subr.mxu0 0.0
  %199 = vmatpush1.msra.mxu0 0.0
  %200 = vmatprep.subr.mxu0 0.0
  %201 = vmatpush1.msra.mxu0 0.0
  %202 = vmatprep.subr.mxu0 0.0
  %203 = vmatpush1.msra.mxu0 0.0
  %204 = vmatprep.subr.mxu0 0.0
  %205 = vmatpush1.msra.mxu0 0.0
  %206 = vmatprep.subr.mxu0 0.0
  %207 = vmatpush1.msra.mxu0 0.0
  %208 = vmatprep.subr.mxu0 0.0
  %209 = vmatpush1.msra.mxu0 0.0
  %210 = vmatprep.subr.mxu0 0.0
  %211 = vmatpush1.msra.mxu0 0.0
  %212 = vmatprep.subr.mxu0 0.0
  %213 = vmatpush1.msra.mxu0 0.0
  %214 = vmatprep.subr.mxu0 0.0
  %215 = vmatpush1.msra.mxu0 0.0
  %216 = vmatprep.subr.mxu0 0.0
  %217 = vmatpush1.msra.mxu0 0.0
  %218 = vmatprep.subr.mxu0 0.0
  %219 = vmatpush1.msra.mxu0 0.0
  %220 = vmatprep.subr.mxu0 0.0
  %221 = vmatpush1.msra.mxu0 0.0
  %222 = vmatprep.subr.mxu0 0.0
  %223 = vmatpush1.msra.mxu0 0.0
  %224 = vmatprep.mubr.f32.mxu0 0.0
  %225 = vmatmul.mubr.f32.gmra.mrb[0].mxu0 %v87
  %v226 = vpop.f32.mrb[0].mxu0
  %v227 = vadd.f32 0.0, %v226
  %v228 = vpop.f32.mrb[0].mxu0
  %229 = vdwg.mxu0
  %v230 = vadd.f32 %v156, %v61
  %v231 = vxor.u32 %v230, 2147483648
  %v232 = vmul.f32 %v231, 1.442695
  %v233 = vpow.pop %v232
  %v234 = vadd.f32 %v233, 1.0
  %v235 = vrcp.pop %v234
  %v236 = vmul.f32 1.0, %v235
  %v237 = vadd.f32 %v158, %v68
  %v238 = vxor.u32 %v237, 2147483648
  %v239 = vmul.f32 %v238, 1.442695
  %v240 = vpow.pop %v239
  %v241 = vadd.f32 %v240, 1.0
  %v242 = vrcp.pop %v241
  %v243 = vmul.f32 1.0, %v242
  %v244 = vadd.f32 %v227, %v75
  %v245 = vmul.f32 %v236, %v244
  %v246 = vadd.f32 %v82, %v245
  %v247 = vtanh.pop %v246
  %v248 = vsub.f32 1.0, %v243
  %v249 = vmul.f32 %v248, %v247
  %v250 = vmul.f32 %v243, %v84
  %v251 = vadd.f32 %v249, %v250
  %vm252 = vcmask 517120
  %253 = vst.msk [vmem:[#allocation2] sm:$0x3] %vm252, %v251
  %v255 = vsel %vm85, %v251, 0
  %257 = vmatprep.subr.mxu0 %v33
  %258 = vmatpush1.msra.mxu0 %v32
  %259 = vmatprep.subr.mxu0 %v36
  %260 = vmatpush1.msra.mxu0 %v35
  %261 = vmatprep.subr.mxu0 %v39
  %262 = vmatpush1.msra.mxu0 %v38
  %263 = vmatprep.subr.mxu0 %v42
  %264 = vmatpush1.msra.mxu0 %v41
  %265 = vmatprep.subr.mxu0 %v45
  %266 = vmatpush1.msra.mxu0 %v44
  %267 = vmatprep.subr.mxu0 %v48
  %268 = vmatpush1.msra.mxu0 %v47
  %269 = vmatprep.subr.mxu0 %v51
  %270 = vmatpush1.msra.mxu0 %v50
  %271 = vmatprep.subr.mxu0 %v54
  %272 = vmatpush1.msra.mxu0 %v53
  %273 = vmatprep.subr.mxu0 0.0
  %274 = vmatpush1.msra.mxu0 0.0
  %275 = vmatprep.subr.mxu0 0.0
  %276 = vmatpush1.msra.mxu0 0.0
  %277 = vmatprep.subr.mxu0 0.0
  %278 = vmatpush1.msra.mxu0 0.0
  %279 = vmatprep.subr.mxu0 0.0
  %280 = vmatpush1.msra.mxu0 0.0
  %281 = vmatprep.subr.mxu0 0.0
  %282 = vmatpush1.msra.mxu0 0.0
  %283 = vmatprep.subr.mxu0 0.0
  %284 = vmatpush1.msra.mxu0 0.0
  %285 = vmatprep.subr.mxu0 0.0
  %286 = vmatpush1.msra.mxu0 0.0
  %287 = vmatprep.subr.mxu0 0.0
  %288 = vmatpush1.msra.mxu0 0.0
  %289 = vmatprep.subr.mxu0 0.0
  %290 = vmatpush1.msra.mxu0 0.0
  %291 = vmatprep.subr.mxu0 0.0
  %292 = vmatpush1.msra.mxu0 0.0
  %293 = vmatprep.subr.mxu0 0.0
  %294 = vmatpush1.msra.mxu0 0.0
  %295 = vmatprep.subr.mxu0 0.0
  %296 = vmatpush1.msra.mxu0 0.0
  %297 = vmatprep.subr.mxu0 0.0
  %298 = vmatpush1.msra.mxu0 0.0
  %299 = vmatprep.subr.mxu0 0.0
  %300 = vmatpush1.msra.mxu0 0.0
  %301 = vmatprep.subr.mxu0 0.0
  %302 = vmatpush1.msra.mxu0 0.0
  %303 = vmatprep.subr.mxu0 0.0
  %304 = vmatpush1.msra.mxu0 0.0
  %305 = vmatprep.subr.mxu0 0.0
  %306 = vmatpush1.msra.mxu0 0.0
  %307 = vmatprep.subr.mxu0 0.0
  %308 = vmatpush1.msra.mxu0 0.0
  %309 = vmatprep.subr.mxu0 0.0
  %310 = vmatpush1.msra.mxu0 0.0
  %311 = vmatprep.subr.mxu0 0.0
  %312 = vmatpush1.msra.mxu0 0.0
  %313 = vmatprep.subr.mxu0 0.0
  %314 = vmatpush1.msra.mxu0 0.0
  %315 = vmatprep.subr.mxu0 0.0
  %316 = vmatpush1.msra.mxu0 0.0
  %317 = vmatprep.subr.mxu0 0.0
  %318 = vmatpush1.msra.mxu0 0.0
  %319 = vmatprep.subr.mxu0 0.0
  %320 = vmatpush1.msra.mxu0 0.0
  %321 = vmatprep.mubr.f32.mxu0 0.0
  %322 = vmatmul.mubr.f32.gmra.mrb[0].mxu0 %v255
  %v323 = vpop.f32.mrb[0].mxu0
  %v324 = vadd.f32 0.0, %v323
  %v325 = vpop.f32.mrb[0].mxu0
  %v326 = vadd.f32 0.0, %v325
  %327 = vdwg.mxu0
  %328 = vmatprep.subr.mxu0 0.0
  %329 = vmatpush1.msra.mxu0 %v34
  %330 = vmatprep.subr.mxu0 0.0
  %331 = vmatpush1.msra.mxu0 %v37
  %332 = vmatprep.subr.mxu0 0.0
  %333 = vmatpush1.msra.mxu0 %v40
  %334 = vmatprep.subr.mxu0 0.0
  %335 = vmatpush1.msra.mxu0 %v43
  %336 = vmatprep.subr.mxu0 0.0
  %337 = vmatpush1.msra.mxu0 %v46
  %338 = vmatprep.subr.mxu0 0.0
  %339 = vmatpush1.msra.mxu0 %v49
  %340 = vmatprep.subr.mxu0 0.0
  %341 = vmatpush1.msra.mxu0 %v52
  %342 = vmatprep.subr.mxu0 0.0
  %343 = vmatpush1.msra.mxu0 %v55
  %344 = vmatprep.subr.mxu0 0.0
  %345 = vmatpush1.msra.mxu0 0.0
  %346 = vmatprep.subr.mxu0 0.0
  %347 = vmatpush1.msra.mxu0 0.0
  %348 = vmatprep.subr.mxu0 0.0
  %349 = vmatpush1.msra.mxu0 0.0
  %350 = vmatprep.subr.mxu0 0.0
  %351 = vmatpush1.msra.mxu0 0.0
  %352 = vmatprep.subr.mxu0 0.0
  %353 = vmatpush1.msra.mxu0 0.0
  %354 = vmatprep.subr.mxu0 0.0
  %355 = vmatpush1.msra.mxu0 0.0
  %356 = vmatprep.subr.mxu0 0.0
  %357 = vmatpush1.msra.mxu0 0.0
  %358 = vmatprep.subr.mxu0 0.0
  %359 = vmatpush1.msra.mxu0 0.0
  %360 = vmatprep.subr.mxu0 0.0
  %361 = vmatpush1.msra.mxu0 0.0
  %362 = vmatprep.subr.mxu0 0.0
  %363 = vmatpush1.msra.mxu0 0.0
  %364 = vmatprep.subr.mxu0 0.0
  %365 = vmatpush1.msra.mxu0 0.0
  %366 = vmatprep.subr.mxu0 0.0
  %367 = vmatpush1.msra.mxu0 0.0
  %368 = vmatprep.subr.mxu0 0.0
  %369 = vmatpush1.msra.mxu0 0.0
  %370 = vmatprep.subr.mxu0 0.0
  %371 = vmatpush1.msra.mxu0 0.0
  %372 = vmatprep.subr.mxu0 0.0
  %373 = vmatpush1.msra.mxu0 0.0
  %374 = vmatprep.subr.mxu0 0.0
  %375 = vmatpush1.msra.mxu0 0.0
  %376 = vmatprep.subr.mxu0 0.0
  %377 = vmatpush1.msra.mxu0 0.0
  %378 = vmatprep.subr.mxu0 0.0
  %379 = vmatpush1.msra.mxu0 0.0
  %380 = vmatprep.subr.mxu0 0.0
  %381 = vmatpush1.msra.mxu0 0.0
  %382 = vmatprep.subr.mxu0 0.0
  %383 = vmatpush1.msra.mxu0 0.0
  %384 = vmatprep.subr.mxu0 0.0
  %385 = vmatpush1.msra.mxu0 0.0
  %386 = vmatprep.subr.mxu0 0.0
  %387 = vmatpush1.msra.mxu0 0.0
  %388 = vmatprep.subr.mxu0 0.0
  %389 = vmatpush1.msra.mxu0 0.0
  %390 = vmatprep.subr.mxu0 0.0
  %391 = vmatpush1.msra.mxu0 0.0
  %392 = vmatprep.mubr.f32.mxu0 0.0
  %393 = vmatmul.mubr.f32.gmra.mrb[0].mxu0 %v255
  %v394 = vpop.f32.mrb[0].mxu0
  %v395 = vadd.f32 0.0, %v394
  %v396 = vpop.f32.mrb[0].mxu0
  %397 = vdwg.mxu0
  %v398 = vadd.f32 %v324, %v61
  %v399 = vxor.u32 %v398, 2147483648
  %v400 = vmul.f32 %v399, 1.442695
  %v401 = vpow.pop %v400
  %v402 = vadd.f32 %v401, 1.0
  %v403 = vrcp.pop %v402
  %v404 = vmul.f32 1.0, %v403
  %v405 = vadd.f32 %v326, %v68
  %v406 = vxor.u32 %v405, 2147483648
  %v407 = vmul.f32 %v406, 1.442695
  %v408 = vpow.pop %v407
  %v409 = vadd.f32 %v408, 1.0
  %v410 = vrcp.pop %v409
  %v411 = vmul.f32 1.0, %v410
  %v412 = vadd.f32 %v395, %v75
  %v413 = vmul.f32 %v404, %v412
  %v414 = vadd.f32 %v82, %v413
  %v415 = vtanh.pop %v414
  %v416 = vsub.f32 1.0, %v411
  %v417 = vmul.f32 %v416, %v415
  %v418 = vmul.f32 %v411, %v251
  %v419 = vadd.f32 %v417, %v418
  %420 = vst.msk [vmem:[#allocation2 + $0x2] sm:$0x3] %vm252, %v419
  %v422 = vsel %vm85, %v419, 0
  %424 = vmatprep.subr.mxu0 %v33
  %425 = vmatpush1.msra.mxu0 %v32
  %426 = vmatprep.subr.mxu0 %v36
  %427 = vmatpush1.msra.mxu0 %v35
  %428 = vmatprep.subr.mxu0 %v39
  %429 = vmatpush1.msra.mxu0 %v38
  %430 = vmatprep.subr.mxu0 %v42
  %431 = vmatpush1.msra.mxu0 %v41
  %432 = vmatprep.subr.mxu0 %v45
  %433 = vmatpush1.msra.mxu0 %v44
  %434 = vmatprep.subr.mxu0 %v48
  %435 = vmatpush1.msra.mxu0 %v47
  %436 = vmatprep.subr.mxu0 %v51
  %437 = vmatpush1.msra.mxu0 %v50
  %438 = vmatprep.subr.mxu0 %v54
  %439 = vmatpush1.msra.mxu0 %v53
  %440 = vmatprep.subr.mxu0 0.0
  %441 = vmatpush1.msra.mxu0 0.0
  %442 = vmatprep.subr.mxu0 0.0
  %443 = vmatpush1.msra.mxu0 0.0
  %444 = vmatprep.subr.mxu0 0.0
  %445 = vmatpush1.msra.mxu0 0.0
  %446 = vmatprep.subr.mxu0 0.0
  %447 = vmatpush1.msra.mxu0 0.0
  %448 = vmatprep.subr.mxu0 0.0
  %449 = vmatpush1.msra.mxu0 0.0
  %450 = vmatprep.subr.mxu0 0.0
  %451 = vmatpush1.msra.mxu0 0.0
  %452 = vmatprep.subr.mxu0 0.0
  %453 = vmatpush1.msra.mxu0 0.0
  %454 = vmatprep.subr.mxu0 0.0
  %455 = vmatpush1.msra.mxu0 0.0
  %456 = vmatprep.subr.mxu0 0.0
  %457 = vmatpush1.msra.mxu0 0.0
  %458 = vmatprep.subr.mxu0 0.0
  %459 = vmatpush1.msra.mxu0 0.0
  %460 = vmatprep.subr.mxu0 0.0
  %461 = vmatpush1.msra.mxu0 0.0
  %462 = vmatprep.subr.mxu0 0.0
  %463 = vmatpush1.msra.mxu0 0.0
  %464 = vmatprep.subr.mxu0 0.0
  %465 = vmatpush1.msra.mxu0 0.0
  %466 = vmatprep.subr.mxu0 0.0
  %467 = vmatpush1.msra.mxu0 0.0
  %468 = vmatprep.subr.mxu0 0.0
  %469 = vmatpush1.msra.mxu0 0.0
  %470 = vmatprep.subr.mxu0 0.0
  %471 = vmatpush1.msra.mxu0 0.0
  %472 = vmatprep.subr.mxu0 0.0
  %473 = vmatpush1.msra.mxu0 0.0
  %474 = vmatprep.subr.mxu0 0.0
  %475 = vmatpush1.msra.mxu0 0.0
  %476 = vmatprep.subr.mxu0 0.0
  %477 = vmatpush1.msra.mxu0 0.0
  %478 = vmatprep.subr.mxu0 0.0
  %479 = vmatpush1.msra.mxu0 0.0
  %480 = vmatprep.subr.mxu0 0.0
  %481 = vmatpush1.msra.mxu0 0.0
  %482 = vmatprep.subr.mxu0 0.0
  %483 = vmatpush1.msra.mxu0 0.0
  %484 = vmatprep.subr.mxu0 0.0
  %485 = vmatpush1.msra.mxu0 0.0
  %486 = vmatprep.subr.mxu0 0.0
  %487 = vmatpush1.msra.mxu0 0.0
  %488 = vmatprep.mubr.f32.mxu0 0.0
  %489 = vmatmul.mubr.f32.gmra.mrb[0].mxu0 %v422
  %v490 = vpop.f32.mrb[0].mxu0
  %v491 = vadd.f32 0.0, %v490
  %v492 = vpop.f32.mrb[0].mxu0
  %v493 = vadd.f32 0.0, %v492
  %494 = vdwg.mxu0
  %495 = vmatprep.subr.mxu0 0.0
  %496 = vmatpush1.msra.mxu0 %v34
  %497 = vmatprep.subr.mxu0 0.0
  %498 = vmatpush1.msra.mxu0 %v37
  %499 = vmatprep.subr.mxu0 0.0
  %500 = vmatpush1.msra.mxu0 %v40
  %501 = vmatprep.subr.mxu0 0.0
  %502 = vmatpush1.msra.mxu0 %v43
  %503 = vmatprep.subr.mxu0 0.0
  %504 = vmatpush1.msra.mxu0 %v46
  %505 = vmatprep.subr.mxu0 0.0
  %506 = vmatpush1.msra.mxu0 %v49
  %507 = vmatprep.subr.mxu0 0.0
  %508 = vmatpush1.msra.mxu0 %v52
  %509 = vmatprep.subr.mxu0 0.0
  %510 = vmatpush1.msra.mxu0 %v55
  %511 = vmatprep.subr.mxu0 0.0
  %512 = vmatpush1.msra.mxu0 0.0
  %513 = vmatprep.subr.mxu0 0.0
  %514 = vmatpush1.msra.mxu0 0.0
  %515 = vmatprep.subr.mxu0 0.0
  %516 = vmatpush1.msra.mxu0 0.0
  %517 = vmatprep.subr.mxu0 0.0
  %518 = vmatpush1.msra.mxu0 0.0
  %519 = vmatprep.subr.mxu0 0.0
  %520 = vmatpush1.msra.mxu0 0.0
  %521 = vmatprep.subr.mxu0 0.0
  %522 = vmatpush1.msra.mxu0 0.0
  %523 = vmatprep.subr.mxu0 0.0
  %524 = vmatpush1.msra.mxu0 0.0
  %525 = vmatprep.subr.mxu0 0.0
  %526 = vmatpush1.msra.mxu0 0.0
  %527 = vmatprep.subr.mxu0 0.0
  %528 = vmatpush1.msra.mxu0 0.0
  %529 = vmatprep.subr.mxu0 0.0
  %530 = vmatpush1.msra.mxu0 0.0
  %531 = vmatprep.subr.mxu0 0.0
  %532 = vmatpush1.msra.mxu0 0.0
  %533 = vmatprep.subr.mxu0 0.0
  %534 = vmatpush1.msra.mxu0 0.0
  %535 = vmatprep.subr.mxu0 0.0
  %536 = vmatpush1.msra.mxu0 0.0
  %537 = vmatprep.subr.mxu0 0.0
  %538 = vmatpush1.msra.mxu0 0.0
  %539 = vmatprep.subr.mxu0 0.0
  %540 = vmatpush1.msra.mxu0 0.0
  %541 = vmatprep.subr.mxu0 0.0
  %542 = vmatpush1.msra.mxu0 0.0
  %543 = vmatprep.subr.mxu0 0.0
  %544 = vmatpush1.msra.mxu0 0.0
  %545 = vmatprep.subr.mxu0 0.0
  %546 = vmatpush1.msra.mxu0 0.0
  %547 = vmatprep.subr.mxu0 0.0
  %548 = vmatpush1.msra.mxu0 0.0
  %549 = vmatprep.subr.mxu0 0.0
  %550 = vmatpush1.msra.mxu0 0.0
  %551 = vmatprep.subr.mxu0 0.0
  %552 = vmatpush1.msra.mxu0 0.0
  %553 = vmatprep.subr.mxu0 0.0
  %554 = vmatpush1.msra.mxu0 0.0
  %555 = vmatprep.subr.mxu0 0.0
  %556 = vmatpush1.msra.mxu0 0.0
  %557 = vmatprep.subr.mxu0 0.0
  %558 = vmatpush1.msra.mxu0 0.0
  %559 = vmatprep.mubr.f32.mxu0 0.0
  %560 = vmatmul.mubr.f32.gmra.mrb[0].mxu0 %v422
  %v561 = vpop.f32.mrb[0].mxu0
  %v562 = vadd.f32 0.0, %v561
  %v563 = vpop.f32.mrb[0].mxu0
  %564 = vdwg.mxu0
  %v565 = vadd.f32 %v491, %v61
  %v566 = vxor.u32 %v565, 2147483648
  %v567 = vmul.f32 %v566, 1.442695
  %v568 = vpow.pop %v567
  %v569 = vadd.f32 %v568, 1.0
  %v570 = vrcp.pop %v569
  %v571 = vmul.f32 1.0, %v570
  %v572 = vadd.f32 %v493, %v68
  %v573 = vxor.u32 %v572, 2147483648
  %v574 = vmul.f32 %v573, 1.442695
  %v575 = vpow.pop %v574
  %v576 = vadd.f32 %v575, 1.0
  %v577 = vrcp.pop %v576
  %v578 = vmul.f32 1.0, %v577
  %v579 = vadd.f32 %v562, %v75
  %v580 = vmul.f32 %v571, %v579
  %v581 = vadd.f32 %v82, %v580
  %v582 = vtanh.pop %v581
  %v583 = vsub.f32 1.0, %v578
  %v584 = vmul.f32 %v583, %v582
  %v585 = vmul.f32 %v578, %v419
  %v586 = vadd.f32 %v584, %v585
  %587 = vst.msk [vmem:[#allocation2 + $0x4] sm:$0x3] %vm252, %v586
  %v589 = vsel %vm85, %v586, 0
  %591 = vmatprep.subr.mxu0 %v33
  %592 = vmatpush1.msra.mxu0 %v32
  %593 = vmatprep.subr.mxu0 %v36
  %594 = vmatpush1.msra.mxu0 %v35
  %595 = vmatprep.subr.mxu0 %v39
  %596 = vmatpush1.msra.mxu0 %v38
  %597 = vmatprep.subr.mxu0 %v42
  %598 = vmatpush1.msra.mxu0 %v41
  %599 = vmatprep.subr.mxu0 %v45
  %600 = vmatpush1.msra.mxu0 %v44
  %601 = vmatprep.subr.mxu0 %v48
  %602 = vmatpush1.msra.mxu0 %v47
  %603 = vmatprep.subr.mxu0 %v51
  %604 = vmatpush1.msra.mxu0 %v50
  %605 = vmatprep.subr.mxu0 %v54
  %606 = vmatpush1.msra.mxu0 %v53
  %607 = vmatprep.subr.mxu0 0.0
  %608 = vmatpush1.msra.mxu0 0.0
  %609 = vmatprep.subr.mxu0 0.0
  %610 = vmatpush1.msra.mxu0 0.0
  %611 = vmatprep.subr.mxu0 0.0
  %612 = vmatpush1.msra.mxu0 0.0
  %613 = vmatprep.subr.mxu0 0.0
  %614 = vmatpush1.msra.mxu0 0.0
  %615 = vmatprep.subr.mxu0 0.0
  %616 = vmatpush1.msra.mxu0 0.0
  %617 = vmatprep.subr.mxu0 0.0
  %618 = vmatpush1.msra.mxu0 0.0
  %619 = vmatprep.subr.mxu0 0.0
  %620 = vmatpush1.msra.mxu0 0.0
  %621 = vmatprep.subr.mxu0 0.0
  %622 = vmatpush1.msra.mxu0 0.0
  %623 = vmatprep.subr.mxu0 0.0
  %624 = vmatpush1.msra.mxu0 0.0
  %625 = vmatprep.subr.mxu0 0.0
  %626 = vmatpush1.msra.mxu0 0.0
  %627 = vmatprep.subr.mxu0 0.0
  %628 = vmatpush1.msra.mxu0 0.0
  %629 = vmatprep.subr.mxu0 0.0
  %630 = vmatpush1.msra.mxu0 0.0
  %631 = vmatprep.subr.mxu0 0.0
  %632 = vmatpush1.msra.mxu0 0.0
  %633 = vmatprep.subr.mxu0 0.0
  %634 = vmatpush1.msra.mxu0 0.0
  %635 = vmatprep.subr.mxu0 0.0
  %636 = vmatpush1.msra.mxu0 0.0
  %637 = vmatprep.subr.mxu0 0.0
  %638 = vmatpush1.msra.mxu0 0.0
  %639 = vmatprep.subr.mxu0 0.0
  %640 = vmatpush1.msra.mxu0 0.0
  %641 = vmatprep.subr.mxu0 0.0
  %642 = vmatpush1.msra.mxu0 0.0
  %643 = vmatprep.subr.mxu0 0.0
  %644 = vmatpush1.msra.mxu0 0.0
  %645 = vmatprep.subr.mxu0 0.0
  %646 = vmatpush1.msra.mxu0 0.0
  %647 = vmatprep.subr.mxu0 0.0
  %648 = vmatpush1.msra.mxu0 0.0
  %649 = vmatprep.subr.mxu0 0.0
  %650 = vmatpush1.msra.mxu0 0.0
  %651 = vmatprep.subr.mxu0 0.0
  %652 = vmatpush1.msra.mxu0 0.0
  %653 = vmatprep.subr.mxu0 0.0
  %654 = vmatpush1.msra.mxu0 0.0
  %655 = vmatprep.mubr.f32.mxu0 0.0
  %656 = vmatmul.mubr.f32.gmra.mrb[0].mxu0 %v589
  %v657 = vpop.f32.mrb[0].mxu0
  %v658 = vadd.f32 0.0, %v657
  %v659 = vpop.f32.mrb[0].mxu0
  %v660 = vadd.f32 0.0, %v659
  %661 = vdwg.mxu0
  %662 = vmatprep.subr.mxu0 0.0
  %663 = vmatpush1.msra.mxu0 %v34
  %664 = vmatprep.subr.mxu0 0.0
  %665 = vmatpush1.msra.mxu0 %v37
  %666 = vmatprep.subr.mxu0 0.0
  %667 = vmatpush1.msra.mxu0 %v40
  %668 = vmatprep.subr.mxu0 0.0
  %669 = vmatpush1.msra.mxu0 %v43
  %670 = vmatprep.subr.mxu0 0.0
  %671 = vmatpush1.msra.mxu0 %v46
  %672 = vmatprep.subr.mxu0 0.0
  %673 = vmatpush1.msra.mxu0 %v49
  %674 = vmatprep.subr.mxu0 0.0
  %675 = vmatpush1.msra.mxu0 %v52
  %676 = vmatprep.subr.mxu0 0.0
  %677 = vmatpush1.msra.mxu0 %v55
  %678 = vmatprep.subr.mxu0 0.0
  %679 = vmatpush1.msra.mxu0 0.0
  %680 = vmatprep.subr.mxu0 0.0
  %681 = vmatpush1.msra.mxu0 0.0
  %682 = vmatprep.subr.mxu0 0.0
  %683 = vmatpush1.msra.mxu0 0.0
  %684 = vmatprep.subr.mxu0 0.0
  %685 = vmatpush1.msra.mxu0 0.0
  %686 = vmatprep.subr.mxu0 0.0
  %687 = vmatpush1.msra.mxu0 0.0
  %688 = vmatprep.subr.mxu0 0.0
  %689 = vmatpush1.msra.mxu0 0.0
  %690 = vmatprep.subr.mxu0 0.0
  %691 = vmatpush1.msra.mxu0 0.0
  %692 = vmatprep.subr.mxu0 0.0
  %693 = vmatpush1.msra.mxu0 0.0
  %694 = vmatprep.subr.mxu0 0.0
  %695 = vmatpush1.msra.mxu0 0.0
  %696 = vmatprep.subr.mxu0 0.0
  %697 = vmatpush1.msra.mxu0 0.0
  %698 = vmatprep.subr.mxu0 0.0
  %699 = vmatpush1.msra.mxu0 0.0
  %700 = vmatprep.subr.mxu0 0.0
  %701 = vmatpush1.msra.mxu0 0.0
  %702 = vmatprep.subr.mxu0 0.0
  %703 = vmatpush1.msra.mxu0 0.0
  %704 = vmatprep.subr.mxu0 0.0
  %705 = vmatpush1.msra.mxu0 0.0
  %706 = vmatprep.subr.mxu0 0.0
  %707 = vmatpush1.msra.mxu0 0.0
  %708 = vmatprep.subr.mxu0 0.0
  %709 = vmatpush1.msra.mxu0 0.0
  %710 = vmatprep.subr.mxu0 0.0
  %711 = vmatpush1.msra.mxu0 0.0
  %712 = vmatprep.subr.mxu0 0.0
  %713 = vmatpush1.msra.mxu0 0.0
  %714 = vmatprep.subr.mxu0 0.0
  %715 = vmatpush1.msra.mxu0 0.0
  %716 = vmatprep.subr.mxu0 0.0
  %717 = vmatpush1.msra.mxu0 0.0
  %718 = vmatprep.subr.mxu0 0.0
  %719 = vmatpush1.msra.mxu0 0.0
  %720 = vmatprep.subr.mxu0 0.0
  %721 = vmatpush1.msra.mxu0 0.0
  %722 = vmatprep.subr.mxu0 0.0
  %723 = vmatpush1.msra.mxu0 0.0
  %724 = vmatprep.subr.mxu0 0.0
  %725 = vmatpush1.msra.mxu0 0.0
  %726 = vmatprep.mubr.f32.mxu0 0.0
  %727 = vmatmul.mubr.f32.gmra.mrb[0].mxu0 %v589
  %v728 = vpop.f32.mrb[0].mxu0
  %v729 = vadd.f32 0.0, %v728
  %v730 = vpop.f32.mrb[0].mxu0
  %731 = vdwg.mxu0
  %v732 = vadd.f32 %v658, %v61
  %v733 = vxor.u32 %v732, 2147483648
  %v734 = vmul.f32 %v733, 1.442695
  %v735 = vpow.pop %v734
  %v736 = vadd.f32 %v735, 1.0
  %v737 = vrcp.pop %v736
  %v738 = vmul.f32 1.0, %v737
  %v739 = vadd.f32 %v660, %v68
  %v740 = vxor.u32 %v739, 2147483648
  %v741 = vmul.f32 %v740, 1.442695
  %v742 = vpow.pop %v741
  %v743 = vadd.f32 %v742, 1.0
  %v744 = vrcp.pop %v743
  %v745 = vmul.f32 1.0, %v744
  %v746 = vadd.f32 %v729, %v75
  %v747 = vmul.f32 %v738, %v746
  %v748 = vadd.f32 %v82, %v747
  %v749 = vtanh.pop %v748
  %v750 = vsub.f32 1.0, %v745
  %v751 = vmul.f32 %v750, %v749
  %v752 = vmul.f32 %v745, %v586
  %v753 = vadd.f32 %v751, %v752
  %754 = vst.msk [vmem:[#allocation2 + $0x6] sm:$0x3] %vm252, %v753
  %v756 = vsel %vm85, %v753, 0
  %758 = vmatprep.subr.mxu0 %v33
  %759 = vmatpush1.msra.mxu0 %v32
  %760 = vmatprep.subr.mxu0 %v36
  %761 = vmatpush1.msra.mxu0 %v35
  %762 = vmatprep.subr.mxu0 %v39
  %763 = vmatpush1.msra.mxu0 %v38
  %764 = vmatprep.subr.mxu0 %v42
  %765 = vmatpush1.msra.mxu0 %v41
  %766 = vmatprep.subr.mxu0 %v45
  %767 = vmatpush1.msra.mxu0 %v44
  %768 = vmatprep.subr.mxu0 %v48
  %769 = vmatpush1.msra.mxu0 %v47
  %770 = vmatprep.subr.mxu0 %v51
  %771 = vmatpush1.msra.mxu0 %v50
  %772 = vmatprep.subr.mxu0 %v54
  %773 = vmatpush1.msra.mxu0 %v53
  %774 = vmatprep.subr.mxu0 0.0
  %775 = vmatpush1.msra.mxu0 0.0
  %776 = vmatprep.subr.mxu0 0.0
  %777 = vmatpush1.msra.mxu0 0.0
  %778 = vmatprep.subr.mxu0 0.0
  %779 = vmatpush1.msra.mxu0 0.0
  %780 = vmatprep.subr.mxu0 0.0
  %781 = vmatpush1.msra.mxu0 0.0
  %782 = vmatprep.subr.mxu0 0.0
  %783 = vmatpush1.msra.mxu0 0.0
  %784 = vmatprep.subr.mxu0 0.0
  %785 = vmatpush1.msra.mxu0 0.0
  %786 = vmatprep.subr.mxu0 0.0
  %787 = vmatpush1.msra.mxu0 0.0
  %788 = vmatprep.subr.mxu0 0.0
  %789 = vmatpush1.msra.mxu0 0.0
  %790 = vmatprep.subr.mxu0 0.0
  %791 = vmatpush1.msra.mxu0 0.0
  %792 = vmatprep.subr.mxu0 0.0
  %793 = vmatpush1.msra.mxu0 0.0
  %794 = vmatprep.subr.mxu0 0.0
  %795 = vmatpush1.msra.mxu0 0.0
  %796 = vmatprep.subr.mxu0 0.0
  %797 = vmatpush1.msra.mxu0 0.0
  %798 = vmatprep.subr.mxu0 0.0
  %799 = vmatpush1.msra.mxu0 0.0
  %800 = vmatprep.subr.mxu0 0.0
  %801 = vmatpush1.msra.mxu0 0.0
  %802 = vmatprep.subr.mxu0 0.0
  %803 = vmatpush1.msra.mxu0 0.0
  %804 = vmatprep.subr.mxu0 0.0
  %805 = vmatpush1.msra.mxu0 0.0
  %806 = vmatprep.subr.mxu0 0.0
  %807 = vmatpush1.msra.mxu0 0.0
  %808 = vmatprep.subr.mxu0 0.0
  %809 = vmatpush1.msra.mxu0 0.0
  %810 = vmatprep.subr.mxu0 0.0
  %811 = vmatpush1.msra.mxu0 0.0
  %812 = vmatprep.subr.mxu0 0.0
  %813 = vmatpush1.msra.mxu0 0.0
  %814 = vmatprep.subr.mxu0 0.0
  %815 = vmatpush1.msra.mxu0 0.0
  %816 = vmatprep.subr.mxu0 0.0
  %817 = vmatpush1.msra.mxu0 0.0
  %818 = vmatprep.subr.mxu0 0.0
  %819 = vmatpush1.msra.mxu0 0.0
  %820 = vmatprep.subr.mxu0 0.0
  %821 = vmatpush1.msra.mxu0 0.0
  %822 = vmatprep.mubr.f32.mxu0 0.0
  %823 = vmatmul.mubr.f32.gmra.mrb[0].mxu0 %v756
  %v824 = vpop.f32.mrb[0].mxu0
  %v825 = vadd.f32 0.0, %v824
  %v826 = vpop.f32.mrb[0].mxu0
  %v827 = vadd.f32 0.0, %v826
  %828 = vdwg.mxu0
  %829 = vmatprep.subr.mxu0 0.0
  %830 = vmatpush1.msra.mxu0 %v34
  %831 = vmatprep.subr.mxu0 0.0
  %832 = vmatpush1.msra.mxu0 %v37
  %833 = vmatprep.subr.mxu0 0.0
  %834 = vmatpush1.msra.mxu0 %v40
  %835 = vmatprep.subr.mxu0 0.0
  %836 = vmatpush1.msra.mxu0 %v43
  %837 = vmatprep.subr.mxu0 0.0
  %838 = vmatpush1.msra.mxu0 %v46
  %839 = vmatprep.subr.mxu0 0.0
  %840 = vmatpush1.msra.mxu0 %v49
  %841 = vmatprep.subr.mxu0 0.0
  %842 = vmatpush1.msra.mxu0 %v52
  %843 = vmatprep.subr.mxu0 0.0
  %844 = vmatpush1.msra.mxu0 %v55
  %845 = vmatprep.subr.mxu0 0.0
  %846 = vmatpush1.msra.mxu0 0.0
  %847 = vmatprep.subr.mxu0 0.0
  %848 = vmatpush1.msra.mxu0 0.0
  %849 = vmatprep.subr.mxu0 0.0
  %850 = vmatpush1.msra.mxu0 0.0
  %851 = vmatprep.subr.mxu0 0.0
  %852 = vmatpush1.msra.mxu0 0.0
  %853 = vmatprep.subr.mxu0 0.0
  %854 = vmatpush1.msra.mxu0 0.0
  %855 = vmatprep.subr.mxu0 0.0
  %856 = vmatpush1.msra.mxu0 0.0
  %857 = vmatprep.subr.mxu0 0.0
  %858 = vmatpush1.msra.mxu0 0.0
  %859 = vmatprep.subr.mxu0 0.0
  %860 = vmatpush1.msra.mxu0 0.0
  %861 = vmatprep.subr.mxu0 0.0
  %862 = vmatpush1.msra.mxu0 0.0
  %863 = vmatprep.subr.mxu0 0.0
  %864 = vmatpush1.msra.mxu0 0.0
  %865 = vmatprep.subr.mxu0 0.0
  %866 = vmatpush1.msra.mxu0 0.0
  %867 = vmatprep.subr.mxu0 0.0
  %868 = vmatpush1.msra.mxu0 0.0
  %869 = vmatprep.subr.mxu0 0.0
  %870 = vmatpush1.msra.mxu0 0.0
  %871 = vmatprep.subr.mxu0 0.0
  %872 = vmatpush1.msra.mxu0 0.0
  %873 = vmatprep.subr.mxu0 0.0
  %874 = vmatpush1.msra.mxu0 0.0
  %875 = vmatprep.subr.mxu0 0.0
  %876 = vmatpush1.msra.mxu0 0.0
  %877 = vmatprep.subr.mxu0 0.0
  %878 = vmatpush1.msra.mxu0 0.0
  %879 = vmatprep.subr.mxu0 0.0
  %880 = vmatpush1.msra.mxu0 0.0
  %881 = vmatprep.subr.mxu0 0.0
  %882 = vmatpush1.msra.mxu0 0.0
  %883 = vmatprep.subr.mxu0 0.0
  %884 = vmatpush1.msra.mxu0 0.0
  %885 = vmatprep.subr.mxu0 0.0
  %886 = vmatpush1.msra.mxu0 0.0
  %887 = vmatprep.subr.mxu0 0.0
  %888 = vmatpush1.msra.mxu0 0.0
  %889 = vmatprep.subr.mxu0 0.0
  %890 = vmatpush1.msra.mxu0 0.0
  %891 = vmatprep.subr.mxu0 0.0
  %892 = vmatpush1.msra.mxu0 0.0
  %893 = vmatprep.mubr.f32.mxu0 0.0
  %894 = vmatmul.mubr.f32.gmra.mrb[0].mxu0 %v756
  %v895 = vpop.f32.mrb[0].mxu0
  %v896 = vadd.f32 0.0, %v895
  %v897 = vpop.f32.mrb[0].mxu0
  %898 = vdwg.mxu0
  %v899 = vadd.f32 %v825, %v61
  %v900 = vxor.u32 %v899, 2147483648
  %v901 = vmul.f32 %v900, 1.442695
  %v902 = vpow.pop %v901
  %v903 = vadd.f32 %v902, 1.0
  %v904 = vrcp.pop %v903
  %v905 = vmul.f32 1.0, %v904
  %v906 = vadd.f32 %v827, %v68
  %v907 = vxor.u32 %v906, 2147483648
  %v908 = vmul.f32 %v907, 1.442695
  %v909 = vpow.pop %v908
  %v910 = vadd.f32 %v909, 1.0
  %v911 = vrcp.pop %v910
  %v912 = vmul.f32 1.0, %v911
  %v913 = vadd.f32 %v896, %v75
  %v914 = vmul.f32 %v905, %v913
  %v915 = vadd.f32 %v82, %v914
  %v916 = vtanh.pop %v915
  %v917 = vsub.f32 1.0, %v912
  %v918 = vmul.f32 %v917, %v916
  %v919 = vmul.f32 %v912, %v753
  %v920 = vadd.f32 %v918, %v919
  %921 = vst.msk [vmem:[#allocation2 + $0x8] sm:$0x3] %vm252, %v920
  %v923 = vsel %vm85, %v920, 0
  %925 = vmatprep.subr.mxu0 %v33
  %926 = vmatpush1.msra.mxu0 %v32
  %927 = vmatprep.subr.mxu0 %v36
  %928 = vmatpush1.msra.mxu0 %v35
  %929 = vmatprep.subr.mxu0 %v39
  %930 = vmatpush1.msra.mxu0 %v38
  %931 = vmatprep.subr.mxu0 %v42
  %932 = vmatpush1.msra.mxu0 %v41
  %933 = vmatprep.subr.mxu0 %v45
  %934 = vmatpush1.msra.mxu0 %v44
  %935 = vmatprep.subr.mxu0 %v48
  %936 = vmatpush1.msra.mxu0 %v47
  %937 = vmatprep.subr.mxu0 %v51
  %938 = vmatpush1.msra.mxu0 %v50
  %939 = vmatprep.subr.mxu0 %v54
  %940 = vmatpush1.msra.mxu0 %v53
  %941 = vmatprep.subr.mxu0 0.0
  %942 = vmatpush1.msra.mxu0 0.0
  %943 = vmatprep.subr.mxu0 0.0
  %944 = vmatpush1.msra.mxu0 0.0
  %945 = vmatprep.subr.mxu0 0.0
  %946 = vmatpush1.msra.mxu0 0.0
  %947 = vmatprep.subr.mxu0 0.0
  %948 = vmatpush1.msra.mxu0 0.0
  %949 = vmatprep.subr.mxu0 0.0
  %950 = vmatpush1.msra.mxu0 0.0
  %951 = vmatprep.subr.mxu0 0.0
  %952 = vmatpush1.msra.mxu0 0.0
  %953 = vmatprep.subr.mxu0 0.0
  %954 = vmatpush1.msra.mxu0 0.0
  %955 = vmatprep.subr.mxu0 0.0
  %956 = vmatpush1.msra.mxu0 0.0
  %957 = vmatprep.subr.mxu0 0.0
  %958 = vmatpush1.msra.mxu0 0.0
  %959 = vmatprep.subr.mxu0 0.0
  %960 = vmatpush1.msra.mxu0 0.0
  %961 = vmatprep.subr.mxu0 0.0
  %962 = vmatpush1.msra.mxu0 0.0
  %963 = vmatprep.subr.mxu0 0.0
  %964 = vmatpush1.msra.mxu0 0.0
  %965 = vmatprep.subr.mxu0 0.0
  %966 = vmatpush1.msra.mxu0 0.0
  %967 = vmatprep.subr.mxu0 0.0
  %968 = vmatpush1.msra.mxu0 0.0
  %969 = vmatprep.subr.mxu0 0.0
  %970 = vmatpush1.msra.mxu0 0.0
  %971 = vmatprep.subr.mxu0 0.0
  %972 = vmatpush1.msra.mxu0 0.0
  %973 = vmatprep.subr.mxu0 0.0
  %974 = vmatpush1.msra.mxu0 0.0
  %975 = vmatprep.subr.mxu0 0.0
  %976 = vmatpush1.msra.mxu0 0.0
  %977 = vmatprep.subr.mxu0 0.0
  %978 = vmatpush1.msra.mxu0 0.0
  %979 = vmatprep.subr.mxu0 0.0
  %980 = vmatpush1.msra.mxu0 0.0
  %981 = vmatprep.subr.mxu0 0.0
  %982 = vmatpush1.msra.mxu0 0.0
  %983 = vmatprep.subr.mxu0 0.0
  %984 = vmatpush1.msra.mxu0 0.0
  %985 = vmatprep.subr.mxu0 0.0
  %986 = vmatpush1.msra.mxu0 0.0
  %987 = vmatprep.subr.mxu0 0.0
  %988 = vmatpush1.msra.mxu0 0.0
  %989 = vmatprep.mubr.f32.mxu0 0.0
  %990 = vmatmul.mubr.f32.gmra.mrb[0].mxu0 %v923
  %v991 = vpop.f32.mrb[0].mxu0
  %v992 = vadd.f32 0.0, %v991
  %v993 = vpop.f32.mrb[0].mxu0
  %v994 = vadd.f32 0.0, %v993
  %995 = vdwg.mxu0
  %996 = vmatprep.subr.mxu0 0.0
  %997 = vmatpush1.msra.mxu0 %v34
  %998 = vmatprep.subr.mxu0 0.0
  %999 = vmatpush1.msra.mxu0 %v37
  %1000 = vmatprep.subr.mxu0 0.0
  %1001 = vmatpush1.msra.mxu0 %v40
  %1002 = vmatprep.subr.mxu0 0.0
  %1003 = vmatpush1.msra.mxu0 %v43
  %1004 = vmatprep.subr.mxu0 0.0
  %1005 = vmatpush1.msra.mxu0 %v46
  %1006 = vmatprep.subr.mxu0 0.0
  %1007 = vmatpush1.msra.mxu0 %v49
  %1008 = vmatprep.subr.mxu0 0.0
  %1009 = vmatpush1.msra.mxu0 %v52
  %1010 = vmatprep.subr.mxu0 0.0
  %1011 = vmatpush1.msra.mxu0 %v55
  %1012 = vmatprep.subr.mxu0 0.0
  %1013 = vmatpush1.msra.mxu0 0.0
  %1014 = vmatprep.subr.mxu0 0.0
  %1015 = vmatpush1.msra.mxu0 0.0
  %1016 = vmatprep.subr.mxu0 0.0
  %1017 = vmatpush1.msra.mxu0 0.0
  %1018 = vmatprep.subr.mxu0 0.0
  %1019 = vmatpush1.msra.mxu0 0.0
  %1020 = vmatprep.subr.mxu0 0.0
  %1021 = vmatpush1.msra.mxu0 0.0
  %1022 = vmatprep.subr.mxu0 0.0
  %1023 = vmatpush1.msra.mxu0 0.0
  %1024 = vmatprep.subr.mxu0 0.0
  %1025 = vmatpush1.msra.mxu0 0.0
  %1026 = vmatprep.subr.mxu0 0.0
  %1027 = vmatpush1.msra.mxu0 0.0
  %1028 = vmatprep.subr.mxu0 0.0
  %1029 = vmatpush1.msra.mxu0 0.0
  %1030 = vmatprep.subr.mxu0 0.0
  %1031 = vmatpush1.msra.mxu0 0.0
  %1032 = vmatprep.subr.mxu0 0.0
  %1033 = vmatpush1.msra.mxu0 0.0
  %1034 = vmatprep.subr.mxu0 0.0
  %1035 = vmatpush1.msra.mxu0 0.0
  %1036 = vmatprep.subr.mxu0 0.0
  %1037 = vmatpush1.msra.mxu0 0.0
  %1038 = vmatprep.subr.mxu0 0.0
  %1039 = vmatpush1.msra.mxu0 0.0
  %1040 = vmatprep.subr.mxu0 0.0
  %1041 = vmatpush1.msra.mxu0 0.0
  %1042 = vmatprep.subr.mxu0 0.0
  %1043 = vmatpush1.msra.mxu0 0.0
  %1044 = vmatprep.subr.mxu0 0.0
  %1045 = vmatpush1.msra.mxu0 0.0
  %1046 = vmatprep.subr.mxu0 0.0
  %1047 = vmatpush1.msra.mxu0 0.0
  %1048 = vmatprep.subr.mxu0 0.0
  %1049 = vmatpush1.msra.mxu0 0.0
  %1050 = vmatprep.subr.mxu0 0.0
  %1051 = vmatpush1.msra.mxu0 0.0
  %1052 = vmatprep.subr.mxu0 0.0
  %1053 = vmatpush1.msra.mxu0 0.0
  %1054 = vmatprep.subr.mxu0 0.0
  %1055 = vmatpush1.msra.mxu0 0.0
  %1056 = vmatprep.subr.mxu0 0.0
  %1057 = vmatpush1.msra.mxu0 0.0
  %1058 = vmatprep.subr.mxu0 0.0
  %1059 = vmatpush1.msra.mxu0 0.0
  %1060 = vmatprep.mubr.f32.mxu0 0.0
  %1061 = vmatmul.mubr.f32.gmra.mrb[0].mxu0 %v923
  %v1062 = vpop.f32.mrb[0].mxu0
  %v1063 = vadd.f32 0.0, %v1062
  %v1064 = vpop.f32.mrb[0].mxu0
  %1065 = vdwg.mxu0
  %v1066 = vadd.f32 %v992, %v61
  %v1067 = vxor.u32 %v1066, 2147483648
  %v1068 = vmul.f32 %v1067, 1.442695
  %v1069 = vpow.pop %v1068
  %v1070 = vadd.f32 %v1069, 1.0
  %v1071 = vrcp.pop %v1070
  %v1072 = vmul.f32 1.0, %v1071
  %v1073 = vadd.f32 %v994, %v68
  %v1074 = vxor.u32 %v1073, 2147483648
  %v1075 = vmul.f32 %v1074, 1.442695
  %v1076 = vpow.pop %v1075
  %v1077 = vadd.f32 %v1076, 1.0
  %v1078 = vrcp.pop %v1077
  %v1079 = vmul.f32 1.0, %v1078
  %v1080 = vadd.f32 %v1063, %v75
  %v1081 = vmul.f32 %v1072, %v1080
  %v1082 = vadd.f32 %v82, %v1081
  %v1083 = vtanh.pop %v1082
  %v1084 = vsub.f32 1.0, %v1079
  %v1085 = vmul.f32 %v1084, %v1083
  %v1086 = vmul.f32 %v1079, %v920
  %v1087 = vadd.f32 %v1085, %v1086
  %1088 = vst.msk [vmem:[#allocation2 + $0xa] sm:$0x3] %vm252, %v1087
  %v1090 = vsel %vm85, %v1087, 0
  %1092 = vmatprep.subr.mxu0 %v33
  %1093 = vmatpush1.msra.mxu0 %v32
  %1094 = vmatprep.subr.mxu0 %v36
  %1095 = vmatpush1.msra.mxu0 %v35
  %1096 = vmatprep.subr.mxu0 %v39
  %1097 = vmatpush1.msra.mxu0 %v38
  %1098 = vmatprep.subr.mxu0 %v42
  %1099 = vmatpush1.msra.mxu0 %v41
  %1100 = vmatprep.subr.mxu0 %v45
  %1101 = vmatpush1.msra.mxu0 %v44
  %1102 = vmatprep.subr.mxu0 %v48
  %1103 = vmatpush1.msra.mxu0 %v47
  %1104 = vmatprep.subr.mxu0 %v51
  %1105 = vmatpush1.msra.mxu0 %v50
  %1106 = vmatprep.subr.mxu0 %v54
  %1107 = vmatpush1.msra.mxu0 %v53
  %1108 = vmatprep.subr.mxu0 0.0
  %1109 = vmatpush1.msra.mxu0 0.0
  %1110 = vmatprep.subr.mxu0 0.0
  %1111 = vmatpush1.msra.mxu0 0.0
  %1112 = vmatprep.subr.mxu0 0.0
  %1113 = vmatpush1.msra.mxu0 0.0
  %1114 = vmatprep.subr.mxu0 0.0
  %1115 = vmatpush1.msra.mxu0 0.0
  %1116 = vmatprep.subr.mxu0 0.0
  %1117 = vmatpush1.msra.mxu0 0.0
  %1118 = vmatprep.subr.mxu0 0.0
  %1119 = vmatpush1.msra.mxu0 0.0
  %1120 = vmatprep.subr.mxu0 0.0
  %1121 = vmatpush1.msra.mxu0 0.0
  %1122 = vmatprep.subr.mxu0 0.0
  %1123 = vmatpush1.msra.mxu0 0.0
  %1124 = vmatprep.subr.mxu0 0.0
  %1125 = vmatpush1.msra.mxu0 0.0
  %1126 = vmatprep.subr.mxu0 0.0
  %1127 = vmatpush1.msra.mxu0 0.0
  %1128 = vmatprep.subr.mxu0 0.0
  %1129 = vmatpush1.msra.mxu0 0.0
  %1130 = vmatprep.subr.mxu0 0.0
  %1131 = vmatpush1.msra.mxu0 0.0
  %1132 = vmatprep.subr.mxu0 0.0
  %1133 = vmatpush1.msra.mxu0 0.0
  %1134 = vmatprep.subr.mxu0 0.0
  %1135 = vmatpush1.msra.mxu0 0.0
  %1136 = vmatprep.subr.mxu0 0.0
  %1137 = vmatpush1.msra.mxu0 0.0
  %1138 = vmatprep.subr.mxu0 0.0
  %1139 = vmatpush1.msra.mxu0 0.0
  %1140 = vmatprep.subr.mxu0 0.0
  %1141 = vmatpush1.msra.mxu0 0.0
  %1142 = vmatprep.subr.mxu0 0.0
  %1143 = vmatpush1.msra.mxu0 0.0
  %1144 = vmatprep.subr.mxu0 0.0
  %1145 = vmatpush1.msra.mxu0 0.0
  %1146 = vmatprep.subr.mxu0 0.0
  %1147 = vmatpush1.msra.mxu0 0.0
  %1148 = vmatprep.subr.mxu0 0.0
  %1149 = vmatpush1.msra.mxu0 0.0
  %1150 = vmatprep.subr.mxu0 0.0
  %1151 = vmatpush1.msra.mxu0 0.0
  %1152 = vmatprep.subr.mxu0 0.0
  %1153 = vmatpush1.msra.mxu0 0.0
  %1154 = vmatprep.subr.mxu0 0.0
  %1155 = vmatpush1.msra.mxu0 0.0
  %1156 = vmatprep.mubr.f32.mxu0 0.0
  %1157 = vmatmul.mubr.f32.gmra.mrb[0].mxu0 %v1090
  %v1158 = vpop.f32.mrb[0].mxu0
  %v1159 = vadd.f32 0.0, %v1158
  %v1160 = vpop.f32.mrb[0].mxu0
  %v1161 = vadd.f32 0.0, %v1160
  %1162 = vdwg.mxu0
  %1163 = vmatprep.subr.mxu0 0.0
  %1164 = vmatpush1.msra.mxu0 %v34
  %1165 = vmatprep.subr.mxu0 0.0
  %1166 = vmatpush1.msra.mxu0 %v37
  %1167 = vmatprep.subr.mxu0 0.0
  %1168 = vmatpush1.msra.mxu0 %v40
  %1169 = vmatprep.subr.mxu0 0.0
  %1170 = vmatpush1.msra.mxu0 %v43
  %1171 = vmatprep.subr.mxu0 0.0
  %1172 = vmatpush1.msra.mxu0 %v46
  %1173 = vmatprep.subr.mxu0 0.0
  %1174 = vmatpush1.msra.mxu0 %v49
  %1175 = vmatprep.subr.mxu0 0.0
  %1176 = vmatpush1.msra.mxu0 %v52
  %1177 = vmatprep.subr.mxu0 0.0
  %1178 = vmatpush1.msra.mxu0 %v55
  %1179 = vmatprep.subr.mxu0 0.0
  %1180 = vmatpush1.msra.mxu0 0.0
  %1181 = vmatprep.subr.mxu0 0.0
  %1182 = vmatpush1.msra.mxu0 0.0
  %1183 = vmatprep.subr.mxu0 0.0
  %1184 = vmatpush1.msra.mxu0 0.0
  %1185 = vmatprep.subr.mxu0 0.0
  %1186 = vmatpush1.msra.mxu0 0.0
  %1187 = vmatprep.subr.mxu0 0.0
  %1188 = vmatpush1.msra.mxu0 0.0
  %1189 = vmatprep.subr.mxu0 0.0
  %1190 = vmatpush1.msra.mxu0 0.0
  %1191 = vmatprep.subr.mxu0 0.0
  %1192 = vmatpush1.msra.mxu0 0.0
  %1193 = vmatprep.subr.mxu0 0.0
  %1194 = vmatpush1.msra.mxu0 0.0
  %1195 = vmatprep.subr.mxu0 0.0
  %1196 = vmatpush1.msra.mxu0 0.0
  %1197 = vmatprep.subr.mxu0 0.0
  %1198 = vmatpush1.msra.mxu0 0.0
  %1199 = vmatprep.subr.mxu0 0.0
  %1200 = vmatpush1.msra.mxu0 0.0
  %1201 = vmatprep.subr.mxu0 0.0
  %1202 = vmatpush1.msra.mxu0 0.0
  %1203 = vmatprep.subr.mxu0 0.0
  %1204 = vmatpush1.msra.mxu0 0.0
  %1205 = vmatprep.subr.mxu0 0.0
  %1206 = vmatpush1.msra.mxu0 0.0
  %1207 = vmatprep.subr.mxu0 0.0
  %1208 = vmatpush1.msra.mxu0 0.0
  %1209 = vmatprep.subr.mxu0 0.0
  %1210 = vmatpush1.msra.mxu0 0.0
  %1211 = vmatprep.subr.mxu0 0.0
  %1212 = vmatpush1.msra.mxu0 0.0
  %1213 = vmatprep.subr.mxu0 0.0
  %1214 = vmatpush1.msra.mxu0 0.0
  %1215 = vmatprep.subr.mxu0 0.0
  %1216 = vmatpush1.msra.mxu0 0.0
  %1217 = vmatprep.subr.mxu0 0.0
  %1218 = vmatpush1.msra.mxu0 0.0
  %1219 = vmatprep.subr.mxu0 0.0
  %1220 = vmatpush1.msra.mxu0 0.0
  %1221 = vmatprep.subr.mxu0 0.0
  %1222 = vmatpush1.msra.mxu0 0.0
  %1223 = vmatprep.subr.mxu0 0.0
  %1224 = vmatpush1.msra.mxu0 0.0
  %1225 = vmatprep.subr.mxu0 0.0
  %1226 = vmatpush1.msra.mxu0 0.0
  %1227 = vmatprep.mubr.f32.mxu0 0.0
  %1228 = vmatmul.mubr.f32.gmra.mrb[0].mxu0 %v1090
  %v1229 = vpop.f32.mrb[0].mxu0
  %v1230 = vadd.f32 0.0, %v1229
  %v1231 = vpop.f32.mrb[0].mxu0
  %1232 = vdwg.mxu0
  %v1233 = vadd.f32 %v1159, %v61
  %v1234 = vxor.u32 %v1233, 2147483648
  %v1235 = vmul.f32 %v1234, 1.442695
  %v1236 = vpow.pop %v1235
  %v1237 = vadd.f32 %v1236, 1.0
  %v1238 = vrcp.pop %v1237
  %v1239 = vmul.f32 1.0, %v1238
  %v1240 = vadd.f32 %v1161, %v68
  %v1241 = vxor.u32 %v1240, 2147483648
  %v1242 = vmul.f32 %v1241, 1.442695
  %v1243 = vpow.pop %v1242
  %v1244 = vadd.f32 %v1243, 1.0
  %v1245 = vrcp.pop %v1244
  %v1246 = vmul.f32 1.0, %v1245
  %v1247 = vadd.f32 %v1230, %v75
  %v1248 = vmul.f32 %v1239, %v1247
  %v1249 = vadd.f32 %v82, %v1248
  %v1250 = vtanh.pop %v1249
  %v1251 = vsub.f32 1.0, %v1246
  %v1252 = vmul.f32 %v1251, %v1250
  %v1253 = vmul.f32 %v1246, %v1087
  %v1254 = vadd.f32 %v1252, %v1253
  %1255 = vst.msk [vmem:[#allocation2 + $0xc] sm:$0x3] %vm252, %v1254
  %v1257 = vsel %vm85, %v1254, 0
  %1259 = vmatprep.subr.mxu0 %v33
  %1260 = vmatpush1.msra.mxu0 %v32
  %1261 = vmatprep.subr.mxu0 %v36
  %1262 = vmatpush1.msra.mxu0 %v35
  %1263 = vmatprep.subr.mxu0 %v39
  %1264 = vmatpush1.msra.mxu0 %v38
  %1265 = vmatprep.subr.mxu0 %v42
  %1266 = vmatpush1.msra.mxu0 %v41
  %1267 = vmatprep.subr.mxu0 %v45
  %1268 = vmatpush1.msra.mxu0 %v44
  %1269 = vmatprep.subr.mxu0 %v48
  %1270 = vmatpush1.msra.mxu0 %v47
  %1271 = vmatprep.subr.mxu0 %v51
  %1272 = vmatpush1.msra.mxu0 %v50
  %1273 = vmatprep.subr.mxu0 %v54
  %1274 = vmatpush1.msra.mxu0 %v53
  %1275 = vmatprep.subr.mxu0 0.0
  %1276 = vmatpush1.msra.mxu0 0.0
  %1277 = vmatprep.subr.mxu0 0.0
  %1278 = vmatpush1.msra.mxu0 0.0
  %1279 = vmatprep.subr.mxu0 0.0
  %1280 = vmatpush1.msra.mxu0 0.0
  %1281 = vmatprep.subr.mxu0 0.0
  %1282 = vmatpush1.msra.mxu0 0.0
  %1283 = vmatprep.subr.mxu0 0.0
  %1284 = vmatpush1.msra.mxu0 0.0
  %1285 = vmatprep.subr.mxu0 0.0
  %1286 = vmatpush1.msra.mxu0 0.0
  %1287 = vmatprep.subr.mxu0 0.0
  %1288 = vmatpush1.msra.mxu0 0.0
  %1289 = vmatprep.subr.mxu0 0.0
  %1290 = vmatpush1.msra.mxu0 0.0
  %1291 = vmatprep.subr.mxu0 0.0
  %1292 = vmatpush1.msra.mxu0 0.0
  %1293 = vmatprep.subr.mxu0 0.0
  %1294 = vmatpush1.msra.mxu0 0.0
  %1295 = vmatprep.subr.mxu0 0.0
  %1296 = vmatpush1.msra.mxu0 0.0
  %1297 = vmatprep.subr.mxu0 0.0
  %1298 = vmatpush1.msra.mxu0 0.0
  %1299 = vmatprep.subr.mxu0 0.0
  %1300 = vmatpush1.msra.mxu0 0.0
  %1301 = vmatprep.subr.mxu0 0.0
  %1302 = vmatpush1.msra.mxu0 0.0
  %1303 = vmatprep.subr.mxu0 0.0
  %1304 = vmatpush1.msra.mxu0 0.0
  %1305 = vmatprep.subr.mxu0 0.0
  %1306 = vmatpush1.msra.mxu0 0.0
  %1307 = vmatprep.subr.mxu0 0.0
  %1308 = vmatpush1.msra.mxu0 0.0
  %1309 = vmatprep.subr.mxu0 0.0
  %1310 = vmatpush1.msra.mxu0 0.0
  %1311 = vmatprep.subr.mxu0 0.0
  %1312 = vmatpush1.msra.mxu0 0.0
  %1313 = vmatprep.subr.mxu0 0.0
  %1314 = vmatpush1.msra.mxu0 0.0
  %1315 = vmatprep.subr.mxu0 0.0
  %1316 = vmatpush1.msra.mxu0 0.0
  %1317 = vmatprep.subr.mxu0 0.0
  %1318 = vmatpush1.msra.mxu0 0.0
  %1319 = vmatprep.subr.mxu0 0.0
  %1320 = vmatpush1.msra.mxu0 0.0
  %1321 = vmatprep.subr.mxu0 0.0
  %1322 = vmatpush1.msra.mxu0 0.0
  %1323 = vmatprep.mubr.f32.mxu0 0.0
  %1324 = vmatmul.mubr.f32.gmra.mrb[0].mxu0 %v1257
  %v1325 = vpop.f32.mrb[0].mxu0
  %v1326 = vadd.f32 0.0, %v1325
  %v1327 = vpop.f32.mrb[0].mxu0
  %v1328 = vadd.f32 0.0, %v1327
  %1329 = vdwg.mxu0
  %1330 = vmatprep.subr.mxu0 0.0
  %1331 = vmatpush1.msra.mxu0 %v34
  %1332 = vmatprep.subr.mxu0 0.0
  %1333 = vmatpush1.msra.mxu0 %v37
  %1334 = vmatprep.subr.mxu0 0.0
  %1335 = vmatpush1.msra.mxu0 %v40
  %1336 = vmatprep.subr.mxu0 0.0
  %1337 = vmatpush1.msra.mxu0 %v43
  %1338 = vmatprep.subr.mxu0 0.0
  %1339 = vmatpush1.msra.mxu0 %v46
  %1340 = vmatprep.subr.mxu0 0.0
  %1341 = vmatpush1.msra.mxu0 %v49
  %1342 = vmatprep.subr.mxu0 0.0
  %1343 = vmatpush1.msra.mxu0 %v52
  %1344 = vmatprep.subr.mxu0 0.0
  %1345 = vmatpush1.msra.mxu0 %v55
  %1346 = vmatprep.subr.mxu0 0.0
  %1347 = vmatpush1.msra.mxu0 0.0
  %1348 = vmatprep.subr.mxu0 0.0
  %1349 = vmatpush1.msra.mxu0 0.0
  %1350 = vmatprep.subr.mxu0 0.0
  %1351 = vmatpush1.msra.mxu0 0.0
  %1352 = vmatprep.subr.mxu0 0.0
  %1353 = vmatpush1.msra.mxu0 0.0
  %1354 = vmatprep.subr.mxu0 0.0
  %1355 = vmatpush1.msra.mxu0 0.0
  %1356 = vmatprep.subr.mxu0 0.0
  %1357 = vmatpush1.msra.mxu0 0.0
  %1358 = vmatprep.subr.mxu0 0.0
  %1359 = vmatpush1.msra.mxu0 0.0
  %1360 = vmatprep.subr.mxu0 0.0
  %1361 = vmatpush1.msra.mxu0 0.0
  %1362 = vmatprep.subr.mxu0 0.0
  %1363 = vmatpush1.msra.mxu0 0.0
  %1364 = vmatprep.subr.mxu0 0.0
  %1365 = vmatpush1.msra.mxu0 0.0
  %1366 = vmatprep.subr.mxu0 0.0
  %1367 = vmatpush1.msra.mxu0 0.0
  %1368 = vmatprep.subr.mxu0 0.0
  %1369 = vmatpush1.msra.mxu0 0.0
  %1370 = vmatprep.subr.mxu0 0.0
  %1371 = vmatpush1.msra.mxu0 0.0
  %1372 = vmatprep.subr.mxu0 0.0
  %1373 = vmatpush1.msra.mxu0 0.0
  %1374 = vmatprep.subr.mxu0 0.0
  %1375 = vmatpush1.msra.mxu0 0.0
  %1376 = vmatprep.subr.mxu0 0.0
  %1377 = vmatpush1.msra.mxu0 0.0
  %1378 = vmatprep.subr.mxu0 0.0
  %1379 = vmatpush1.msra.mxu0 0.0
  %1380 = vmatprep.subr.mxu0 0.0
  %1381 = vmatpush1.msra.mxu0 0.0
  %1382 = vmatprep.subr.mxu0 0.0
  %1383 = vmatpush1.msra.mxu0 0.0
  %1384 = vmatprep.subr.mxu0 0.0
  %1385 = vmatpush1.msra.mxu0 0.0
  %1386 = vmatprep.subr.mxu0 0.0
  %1387 = vmatpush1.msra.mxu0 0.0
  %1388 = vmatprep.subr.mxu0 0.0
  %1389 = vmatpush1.msra.mxu0 0.0
  %1390 = vmatprep.subr.mxu0 0.0
  %1391 = vmatpush1.msra.mxu0 0.0
  %1392 = vmatprep.subr.mxu0 0.0
  %1393 = vmatpush1.msra.mxu0 0.0
  %1394 = vmatprep.mubr.f32.mxu0 0.0
  %1395 = vmatmul.mubr.f32.gmra.mrb[0].mxu0 %v1257
  %v1396 = vpop.f32.mrb[0].mxu0
  %v1397 = vadd.f32 0.0, %v1396
  %v1398 = vpop.f32.mrb[0].mxu0
  %1399 = vdwg.mxu0
  %v1400 = vadd.f32 %v1326, %v61
  %v1401 = vxor.u32 %v1400, 2147483648
  %v1402 = vmul.f32 %v1401, 1.442695
  %v1403 = vpow.pop %v1402
  %v1404 = vadd.f32 %v1403, 1.0
  %v1405 = vrcp.pop %v1404
  %v1406 = vmul.f32 1.0, %v1405
  %v1407 = vadd.f32 %v1328, %v68
  %v1408 = vxor.u32 %v1407, 2147483648
  %v1409 = vmul.f32 %v1408, 1.442695
  %v1410 = vpow.pop %v1409
  %v1411 = vadd.f32 %v1410, 1.0
  %v1412 = vrcp.pop %v1411
  %v1413 = vmul.f32 1.0, %v1412
  %v1414 = vadd.f32 %v1397, %v75
  %v1415 = vmul.f32 %v1406, %v1414
  %v1416 = vadd.f32 %v82, %v1415
  %v1417 = vtanh.pop %v1416
  %v1418 = vsub.f32 1.0, %v1413
  %v1419 = vmul.f32 %v1418, %v1417
  %v1420 = vmul.f32 %v1413, %v1254
  %v1421 = vadd.f32 %v1419, %v1420
  %1422 = vst.msk [vmem:[#allocation2 + $0xe] sm:$0x3] %vm252, %v1421
  %v1423 = vld [vmem:[#allocation2] sm:$0xff]
  %v1424 = vld [vmem:[#allocation2 + $0x8] sm:$0xff]
  %v1425 = vld [vmem:[%s6] sm:$0xff]
  %v1426 = vld [vmem:[%s6 + $0x8] sm:$0xff]
  %v1427 = vld [vmem:[%s6 + $0x10] sm:$0xff]
  %v1428 = vld [vmem:[%s6 + $0x18] sm:$0xff]
  %v1429 = vld [vmem:[%s6 + $0x20] sm:$0xff]
  %v1430 = vld [vmem:[%s6 + $0x28] sm:$0xff]
  %v1431 = vld [vmem:[%s6 + $0x30] sm:$0xff]
  %v1432 = vld [vmem:[%s6 + $0x38] sm:$0xff]
  %v1434 = vsel %vm85, %v1423, 0
  %v1437 = vsel %vm85, %v1424, 0
  %1439 = vmatprep.subr.mxu0 0.0
  %1440 = vmatpush1.msra.mxu0 %v1425
  %1441 = vmatprep.subr.mxu0 0.0
  %1442 = vmatpush1.msra.mxu0 %v1426
  %1443 = vmatprep.subr.mxu0 0.0
  %1444 = vmatpush1.msra.mxu0 %v1427
  %1445 = vmatprep.subr.mxu0 0.0
  %1446 = vmatpush1.msra.mxu0 %v1428
  %1447 = vmatprep.subr.mxu0 0.0
  %1448 = vmatpush1.msra.mxu0 %v1429
  %1449 = vmatprep.subr.mxu0 0.0
  %1450 = vmatpush1.msra.mxu0 %v1430
  %1451 = vmatprep.subr.mxu0 0.0
  %1452 = vmatpush1.msra.mxu0 %v1431
  %1453 = vmatprep.subr.mxu0 0.0
  %1454 = vmatpush1.msra.mxu0 %v1432
  %1455 = vmatprep.subr.mxu0 0.0
  %1456 = vmatpush1.msra.mxu0 0.0
  %1457 = vmatprep.subr.mxu0 0.0
  %1458 = vmatpush1.msra.mxu0 0.0
  %1459 = vmatprep.subr.mxu0 0.0
  %1460 = vmatpush1.msra.mxu0 0.0
  %1461 = vmatprep.subr.mxu0 0.0
  %1462 = vmatpush1.msra.mxu0 0.0
  %1463 = vmatprep.subr.mxu0 0.0
  %1464 = vmatpush1.msra.mxu0 0.0
  %1465 = vmatprep.subr.mxu0 0.0
  %1466 = vmatpush1.msra.mxu0 0.0
  %1467 = vmatprep.subr.mxu0 0.0
  %1468 = vmatpush1.msra.mxu0 0.0
  %1469 = vmatprep.subr.mxu0 0.0
  %1470 = vmatpush1.msra.mxu0 0.0
  %1471 = vmatprep.subr.mxu0 0.0
  %1472 = vmatpush1.msra.mxu0 0.0
  %1473 = vmatprep.subr.mxu0 0.0
  %1474 = vmatpush1.msra.mxu0 0.0
  %1475 = vmatprep.subr.mxu0 0.0
  %1476 = vmatpush1.msra.mxu0 0.0
  %1477 = vmatprep.subr.mxu0 0.0
  %1478 = vmatpush1.msra.mxu0 0.0
  %1479 = vmatprep.subr.mxu0 0.0
  %1480 = vmatpush1.msra.mxu0 0.0
  %1481 = vmatprep.subr.mxu0 0.0
  %1482 = vmatpush1.msra.mxu0 0.0
  %1483 = vmatprep.subr.mxu0 0.0
  %1484 = vmatpush1.msra.mxu0 0.0
  %1485 = vmatprep.subr.mxu0 0.0
  %1486 = vmatpush1.msra.mxu0 0.0
  %1487 = vmatprep.subr.mxu0 0.0
  %1488 = vmatpush1.msra.mxu0 0.0
  %1489 = vmatprep.subr.mxu0 0.0
  %1490 = vmatpush1.msra.mxu0 0.0
  %1491 = vmatprep.subr.mxu0 0.0
  %1492 = vmatpush1.msra.mxu0 0.0
  %1493 = vmatprep.subr.mxu0 0.0
  %1494 = vmatpush1.msra.mxu0 0.0
  %1495 = vmatprep.subr.mxu0 0.0
  %1496 = vmatpush1.msra.mxu0 0.0
  %1497 = vmatprep.subr.mxu0 0.0
  %1498 = vmatpush1.msra.mxu0 0.0
  %1499 = vmatprep.subr.mxu0 0.0
  %1500 = vmatpush1.msra.mxu0 0.0
  %1501 = vmatprep.subr.mxu0 0.0
  %1502 = vmatpush1.msra.mxu0 0.0
  %1503 = vmatprep.mubr.f32.mxu0 0.0
  %1504 = vmatmul.mubr.f32.gmra.mrb[0].mxu0 %v1434
  %v1505 = vpop.f32.mrb[0].mxu0
  %v1506 = vadd.f32 0.0, %v1505
  %v1507 = vpop.f32.mrb[0].mxu0
  %1508 = vmatprep.mubr.f32.mxu0 0.0
  %1509 = vmatmul.mubr.f32.gmra.mrb[0].mxu0 %v1437
  %v1510 = vpop.f32.mrb[0].mxu0
  %v1511 = vadd.f32 0.0, %v1510
  %v1512 = vpop.f32.mrb[0].mxu0
  %1513 = vdwg.mxu0
  %v1514 = vld [vmem:[%s7] sm:$0xff]
  %v1515 = vld [vmem:[%s7 + $0x8] sm:$0xff]
  %v1516 = vld [vmem:[%s7 + $0x10] sm:$0xff]
  %v1517 = vld [vmem:[%s7 + $0x18] sm:$0xff]
  %v1518 = vld [vmem:[%s7 + $0x20] sm:$0xff]
  %v1519 = vld [vmem:[%s7 + $0x28] sm:$0xff]
  %v1520 = vld [vmem:[%s7 + $0x30] sm:$0xff]
  %v1521 = vld [vmem:[%s7 + $0x38] sm:$0xff]
  %1522 = vmatprep.subr.mxu0 0.0
  %1523 = vmatpush1.msra.mxu0 %v1514
  %1524 = vmatprep.subr.mxu0 0.0
  %1525 = vmatpush1.msra.mxu0 %v1515
  %1526 = vmatprep.subr.mxu0 0.0
  %1527 = vmatpush1.msra.mxu0 %v1516
  %1528 = vmatprep.subr.mxu0 0.0
  %1529 = vmatpush1.msra.mxu0 %v1517
  %1530 = vmatprep.subr.mxu0 0.0
  %1531 = vmatpush1.msra.mxu0 %v1518
  %1532 = vmatprep.subr.mxu0 0.0
  %1533 = vmatpush1.msra.mxu0 %v1519
  %1534 = vmatprep.subr.mxu0 0.0
  %1535 = vmatpush1.msra.mxu0 %v1520
  %1536 = vmatprep.subr.mxu0 0.0
  %1537 = vmatpush1.msra.mxu0 %v1521
  %1538 = vmatprep.subr.mxu0 0.0
  %1539 = vmatpush1.msra.mxu0 0.0
  %1540 = vmatprep.subr.mxu0 0.0
  %1541 = vmatpush1.msra.mxu0 0.0
  %1542 = vmatprep.subr.mxu0 0.0
  %1543 = vmatpush1.msra.mxu0 0.0
  %1544 = vmatprep.subr.mxu0 0.0
  %1545 = vmatpush1.msra.mxu0 0.0
  %1546 = vmatprep.subr.mxu0 0.0
  %1547 = vmatpush1.msra.mxu0 0.0
  %1548 = vmatprep.subr.mxu0 0.0
  %1549 = vmatpush1.msra.mxu0 0.0
  %1550 = vmatprep.subr.mxu0 0.0
  %1551 = vmatpush1.msra.mxu0 0.0
  %1552 = vmatprep.subr.mxu0 0.0
  %1553 = vmatpush1.msra.mxu0 0.0
  %1554 = vmatprep.subr.mxu0 0.0
  %1555 = vmatpush1.msra.mxu0 0.0
  %1556 = vmatprep.subr.mxu0 0.0
  %1557 = vmatpush1.msra.mxu0 0.0
  %1558 = vmatprep.subr.mxu0 0.0
  %1559 = vmatpush1.msra.mxu0 0.0
  %1560 = vmatprep.subr.mxu0 0.0
  %1561 = vmatpush1.msra.mxu0 0.0
  %1562 = vmatprep.subr.mxu0 0.0
  %1563 = vmatpush1.msra.mxu0 0.0
  %1564 = vmatprep.subr.mxu0 0.0
  %1565 = vmatpush1.msra.mxu0 0.0
  %1566 = vmatprep.subr.mxu0 0.0
  %1567 = vmatpush1.msra.mxu0 0.0
  %1568 = vmatprep.subr.mxu0 0.0
  %1569 = vmatpush1.msra.mxu0 0.0
  %1570 = vmatprep.subr.mxu0 0.0
  %1571 = vmatpush1.msra.mxu0 0.0
  %1572 = vmatprep.subr.mxu0 0.0
  %1573 = vmatpush1.msra.mxu0 0.0
  %1574 = vmatprep.subr.mxu0 0.0
  %1575 = vmatpush1.msra.mxu0 0.0
  %1576 = vmatprep.subr.mxu0 0.0
  %1577 = vmatpush1.msra.mxu0 0.0
  %1578 = vmatprep.subr.mxu0 0.0
  %1579 = vmatpush1.msra.mxu0 0.0
  %1580 = vmatprep.subr.mxu0 0.0
  %1581 = vmatpush1.msra.mxu0 0.0
  %1582 = vmatprep.subr.mxu0 0.0
  %1583 = vmatpush1.msra.mxu0 0.0
  %1584 = vmatprep.subr.mxu0 0.0
  %1585 = vmatpush1.msra.mxu0 0.0
  %1586 = vmatprep.mubr.f32.mxu0 0.0
  %1587 = vmatmul.mubr.f32.gmra.mrb[0].mxu0 %v1434
  %v1588 = vpop.f32.mrb[0].mxu0
  %v1589 = vadd.f32 0.0, %v1588
  %v1590 = vpop.f32.mrb[0].mxu0
  %1591 = vmatprep.mubr.f32.mxu0 0.0
  %1592 = vmatmul.mubr.f32.gmra.mrb[0].mxu0 %v1437
  %v1593 = vpop.f32.mrb[0].mxu0
  %v1594 = vadd.f32 0.0, %v1593
  %v1595 = vpop.f32.mrb[0].mxu0
  %1596 = vdwg.mxu0
  %v1597 = vld [vmem:[%s8] sm:$0x1]
  %v1599 = vrot.slane %v1594, 6
  %v1601 = vadd.f32 %v1506, %v1599
  %v1603 = vlaneseq
  %v1604 = vshrl.u32 %v1603, 7
  %v1605 = vsub.s32 0, %v1604
  %v1606 = vrot.slane %v1597, %v1605
  %v1608 = vadd.f32 %v1601, %v1606
  %v1609 = vtanh.pop %v1608
  %vm1610 = vcmask 17408
  %1611 = vst.msk [vmem:[%s9] sm:$0x3] %vm1610, %v1609
  %v1612 = vrot.slane %v1594, 2
  %v1614 = vadd.f32 %v1506, %v1612
  %v1615 = vadd.f32 %v1614, %v1606
  %v1616 = vtanh.pop %v1615
  %s1617 = scalar_lea.vmem %s9, 2
  %vm1618 = vcmask 19458
  %1619 = vst.msk [vmem:[%s1617 - $0x2] sm:$0xc] %vm1618, %v1616
  %s1620 = scalar_lea.vmem %s9, 4
  %vm1621 = vcmask 21508
  %1622 = vst.msk [vmem:[%s1620 - $0x4] sm:$0x30] %vm1621, %v1609
  %s1623 = scalar_lea.vmem %s9, 6
  %vm1624 = vcmask 23558
  %1625 = vst.msk [vmem:[%s1623 - $0x6] sm:$0xc0] %vm1624, %v1616
  %v1627 = vrot.slane %v1589, 6
  %v1629 = vadd.f32 %v1511, %v1627
  %v1630 = vadd.f32 %v1629, %v1606
  %v1631 = vtanh.pop %v1630
  %s1632 = scalar_lea.vmem %s9, 8
  %1633 = vst.msk [vmem:[%s1632] sm:$0x3] %vm1610, %v1631
  %v1634 = vrot.slane %v1589, 2
  %v1636 = vadd.f32 %v1511, %v1634
  %v1637 = vadd.f32 %v1636, %v1606
  %v1638 = vtanh.pop %v1637
  %s1639 = scalar_lea.vmem %s9, 10
  %1640 = vst.msk [vmem:[%s1639 - $0x2] sm:$0xc] %vm1618, %v1638
  %s1641 = scalar_lea.vmem %s9, 12
  %1642 = vst.msk [vmem:[%s1641 - $0x4] sm:$0x30] %vm1621, %v1631
  %s1643 = scalar_lea.vmem %s9, 14
  %1644 = vst.msk [vmem:[%s1643 - $0x6] sm:$0xc0] %vm1624, %v1638
  // Predicated region
  $region38: #{bond_vector_decoder.1} parent=0 // pred_check
    _
  $region39: #{bond_vector_decoder.1} parent=0 // pred_check_branch
    %1646 = sbr.rel (0) target = $region41
  $region40: #{bond_vector_decoder.1} parent=0 // pred_region
    _
  $region41: #{bond_vector_decoder.1} parent=0 // pred_fallthru
    _
  // Predicated region
  $region42: #{bond_vector_decoder.1} parent=0 // pred_check
    _
  $region43: #{bond_vector_decoder.1} parent=0 // pred_check_branch
    %1648 = sbr.rel (0) target = $region45
  $region44: #{bond_vector_decoder.1} parent=0 // pred_region
    _
  $region45: #{bond_vector_decoder.1} parent=0 // pred_fallthru
    _

</llo_original>
